<compile_context>
chip_gen: v5e
topology: v5e:2x2
jax: 0.10.0
libtpu: 0.0.40
codegen_flags: <defaults>
</compile_context>

<pallas_src>
import math
import functools

import jax
import jax.numpy as jnp
from jax import lax
from jax.experimental import pallas as pl
from jax.experimental.pallas import tpu as pltpu

# ----------------------- small, deterministic config -----------------------
D_EMBED = 32
N_HEADS = 4
D_K = 8
D_V = 8
SEQ = 16
BATCH = 2
NEG_INF = -1e9
LN_EPS = 1e-5
N_IA_TYPES = 402
IA_FEAT_DIM = 6


# ------------------------------ fused Pallas kernel ------------------------------
def _fused_mha_kernel(x_ref, wqkv_ref, bias_ref, keep_ref, wfc_ref, gamma_ref, beta_ref,
                      out_ref, attn_ref, *, batch, seq, d_embed, n_heads, d_k, d_v, eps):
    """Single grid step: full QKV proj, biased/masked attention, fc, residual + LN."""
    x = x_ref[...]                                    # (B*S, 3D); first D lanes = input_Q (residual)

    # One fused QKV projection against the block-diagonal weight (K=96, N=96).
    qkv = jnp.dot(x, wqkv_ref[...], preferred_element_type=jnp.float32)      # (B*S, 3D)
    q_all = qkv[:, :n_heads * d_k]
    k_all = qkv[:, n_heads * d_k:2 * n_heads * d_k]
    v_all = qkv[:, 2 * n_heads * d_k:]

    attn_tiles = []     # collected, lane-concatenated -> one unmasked (S, B*H*S) store
    ctx_rows = []
    for b in range(batch):                            # static, fully unrolled (B=2)
        r0 = b * seq
        qb = q_all[r0:r0 + seq]                       # (S, H*dk) sublane-aligned row slice
        kb = k_all[r0:r0 + seq]
        vb = v_all[r0:r0 + seq]
        ks = keep_ref[b]                              # (S,S): (1-mask)/sqrt(d_k)
        ctx_heads = []
        for h in range(n_heads):                      # static, fully unrolled (H=4)
            qh = qb[:, h * d_k:(h + 1) * d_k]
            kh = kb[:, h * d_k:(h + 1) * d_k]
            vh = vb[:, h * d_v:(h + 1) * d_v]

            # Q @ K^T (contract last dims, no explicit transpose).
            s = lax.dot_general(qh, kh, (((1,), (1,)), ((), ())),
                                preferred_element_type=jnp.float32)          # (S, S)
            # scores = scores1*keep + masked_bias  ==  the three masked_fill_ calls, exactly
            # (masked entries become exactly -1e9, fully-masked rows stay uniform).
            s = s * ks + bias_ref[b, h]

            m = jnp.max(s, axis=-1, keepdims=True)
            e = jnp.exp(s - m)
            l = jnp.sum(e, axis=-1, keepdims=True)
            a = e * pl.reciprocal(l, approx=False)                            # softmax
            attn_tiles.append(a)
            ctx_heads.append(jnp.dot(a, vh, preferred_element_type=jnp.float32))   # (S, dv)
        ctx_rows.append(jnp.concatenate(ctx_heads, axis=-1))                  # (S, H*dv)

    # Single fc matmul for all rows, residual add, LayerNorm.
    ctx2 = jnp.concatenate(ctx_rows, axis=0)                                  # (B*S, H*dv)
    y = x[:, :d_embed] + jnp.dot(ctx2, wfc_ref[...], preferred_element_type=jnp.float32)
    mu = jnp.mean(y, axis=-1, keepdims=True)
    var = jnp.mean((y - mu) ** 2, axis=-1, keepdims=True)
    out_ref[...] = (y - mu) * lax.rsqrt(var + eps) * gamma_ref[...] + beta_ref[...]

    # One lane-dense attention store: (S, B*H*S) = (16, 128).
    attn_ref[...] = jnp.concatenate(attn_tiles, axis=-1)


# ------------------------------ forward (Pallas) ------------------------------
@jax.jit
def mha_rope3d_bias_forward(params, input_Q, input_K, input_V, attn_mask, attn_if,
                            interaction_type, interaction_matrix,
                            res_mass_centor, distance_matrix):
    # res_mass_centor and distance_matrix are accepted but unused (as in the PyTorch forward).
    del res_mass_centor, distance_matrix
    B, S, D = input_Q.shape
    H, dk, dv = N_HEADS, D_K, D_V

    # --- tiny XLA glue (few-KB tensors): embedding gather + 6->H linear + ReLU + mask fold ---
    # TODO(synk): Dropout(0.4) inside ia_feat_linear is identity (eval mode); ln_ia_feat and
    #             scale_factor exist in __init__ but are unused in the PyTorch forward.
    ia_type = jnp.take(params["ia_type_emb"], interaction_type, axis=0)            # [B,S,S,H]
    ia_feat = jnp.maximum(
        interaction_matrix.astype(jnp.float32) @ params["w_ia_feat"], 0.0)          # [B,S,S,H]
    bias = (ia_type + ia_feat).transpose(0, 3, 1, 2)                                 # [B,H,S,S]

    mask_comb = jnp.logical_or(attn_mask, attn_if)                                   # [B,S,S]
    bias_masked = jnp.where(mask_comb[:, None], NEG_INF, bias)                       # [B,H,S,S]
    keep_scaled = jnp.where(mask_comb, 0.0, 1.0 / math.sqrt(dk)).astype(jnp.float32)  # [B,S,S]

    # Lane-concat the three activation streams; first D lanes double as the residual.
    x_cat = jnp.concatenate([input_Q, input_K, input_V], axis=-1).reshape(B * S, 3 * D)

    # Block-diagonal fused QKV weight (3D, 3D) = blockdiag(w_q, w_k, w_v).
    z = jnp.zeros((D, H * dk), jnp.float32)
    w_qkv = jnp.concatenate([
        jnp.concatenate([params["w_q"], z, z], axis=1),
        jnp.concatenate([z, params["w_k"], z], axis=1),
        jnp.concatenate([z, z, params["w_v"]], axis=1)], axis=0)

    kern = functools.partial(_fused_mha_kernel, batch=B, seq=S, d_embed=D,
                             n_heads=H, d_k=dk, d_v=dv, eps=LN_EPS)

    out, attn_flat = pl.pallas_call(
        kern,
        out_shape=(jax.ShapeDtypeStruct((B * S, D), jnp.float32),
                   jax.ShapeDtypeStruct((S, B * H * S), jnp.float32)),
        grid=(1,),                                        # single step: no per-batch grid overhead
        in_specs=[pl.BlockSpec((B * S, 3 * D), lambda i: (0, 0)),
                  pl.BlockSpec((3 * D, 3 * D), lambda i: (0, 0)),
                  pl.BlockSpec((B, H, S, S), lambda i: (0, 0, 0, 0)),
                  pl.BlockSpec((B, S, S), lambda i: (0, 0, 0)),
                  pl.BlockSpec((H * dv, D), lambda i: (0, 0)),
                  pl.BlockSpec((1, D), lambda i: (0, 0)),
                  pl.BlockSpec((1, D), lambda i: (0, 0))],
        out_specs=[pl.BlockSpec((B * S, D), lambda i: (0, 0)),
                   pl.BlockSpec((S, B * H * S), lambda i: (0, 0))],
        compiler_params=pltpu.CompilerParams(dimension_semantics=("arbitrary",)),
        cost_estimate=pl.CostEstimate(flops=760_000, transcendentals=2_048,
                                      bytes_accessed=80_000),
    )(x_cat, w_qkv, bias_masked, keep_scaled, params["w_fc"],
      params["ln_gamma"].reshape(1, D), params["ln_beta"].reshape(1, D))

    out = out.reshape(B, S, D)
    # attn_flat[q, b*H*S + h*S + k] -> (B, H, S, S)
    attn = attn_flat.reshape(S, B, H, S).transpose(1, 2, 0, 3)
    return out, attn


# ------------------------------ pure-JAX reference ------------------------------
def reference_forward(params, input_Q, input_K, input_V, attn_mask, attn_if,
                      interaction_type, interaction_matrix,
                      res_mass_centor, distance_matrix):
    del res_mass_centor, distance_matrix
    B, S, _ = input_Q.shape
    H, dk, dv = N_HEADS, D_K, D_V

    Q = (input_Q.reshape(B * S, D_EMBED) @ params["w_q"]).reshape(B, S, H, dk).transpose(0, 2, 1, 3)
    K = (input_K.reshape(B * S, D_EMBED) @ params["w_k"]).reshape(B, S, H, dk).transpose(0, 2, 1, 3)
    V = (input_V.reshape(B * S, D_EMBED) @ params["w_v"]).reshape(B, S, H, dv).transpose(0, 2, 1, 3)

    ia_type = jnp.take(params["ia_type_emb"], interaction_type, axis=0)
    ia_feat = jnp.maximum(interaction_matrix.astype(jnp.float32) @ params["w_ia_feat"], 0.0)
    bias = (ia_type + ia_feat).transpose(0, 3, 1, 2)

    mask = jnp.broadcast_to(attn_mask[:, None, :, :], (B, H, S, S))
    maskif = jnp.broadcast_to(attn_if[:, None, :, :], (B, H, S, S))

    scores1 = jnp.einsum("bhqd,bhkd->bhqk", Q, K) / math.sqrt(dk)
    bias = jnp.where(maskif, NEG_INF, bias)
    scores = scores1 + bias
    scores = jnp.where(mask, NEG_INF, scores)
    scores = jnp.where(maskif, NEG_INF, scores)
    attn = jax.nn.softmax(scores, axis=-1)
    ctx = jnp.einsum("bhqk,bhkd->bhqd", attn, V)

    ctx2 = ctx.transpose(0, 2, 1, 3).reshape(B * S, H * dv)
    out = ctx2 @ params["w_fc"]
    y = out + input_Q.reshape(B * S, D_EMBED)
    mean = jnp.mean(y, axis=-1, keepdims=True)
    var = jnp.mean((y - mean) ** 2, axis=-1, keepdims=True)
    y = (y - mean) / jnp.sqrt(var + LN_EPS) * params["ln_gamma"] + params["ln_beta"]
    return y.reshape(B, S, D_EMBED), attn


# --------------------------------- main ---------------------------------
if __name__ == "__main__":
    key = jax.random.PRNGKey(0)
    keys = jax.random.split(key, 16)

    # deterministic parameter init (PyTorch weight [out,in] stored transposed as [in,out])
    params = {
        "w_q": 0.1 * jax.random.normal(keys[0], (D_EMBED, N_HEADS * D_K), jnp.float32),
        "w_k": 0.1 * jax.random.normal(keys[1], (D_EMBED, N_HEADS * D_K), jnp.float32),
        "w_v": 0.1 * jax.random.normal(keys[2], (D_EMBED, N_HEADS * D_V), jnp.float32),
        "w_fc": 0.1 * jax.random.normal(keys[3], (N_HEADS * D_V, D_EMBED), jnp.float32),
        "ia_type_emb": 0.1 * jax.random.normal(keys[4], (N_IA_TYPES, N_HEADS), jnp.float32),
        "w_ia_feat": 0.1 * jax.random.normal(keys[5], (IA_FEAT_DIM, N_HEADS), jnp.float32),
        "ln_gamma": jnp.ones((D_EMBED,), jnp.float32),
        "ln_beta": jnp.zeros((D_EMBED,), jnp.float32),
        # nn.Parameter scale_factor and ln_ia_feat exist in __init__ but are unused in forward.
    }

    # deterministic inputs
    input_Q = jax.random.normal(keys[6], (BATCH, SEQ, D_EMBED), jnp.float32)
    input_K = jax.random.normal(keys[7], (BATCH, SEQ, D_EMBED), jnp.float32)
    input_V = jax.random.normal(keys[8], (BATCH, SEQ, D_EMBED), jnp.float32)
    attn_mask = jax.random.bernoulli(keys[9], 0.2, (BATCH, SEQ, SEQ))
    attn_if = jax.random.bernoulli(keys[10], 0.2, (BATCH, SEQ, SEQ))
    interaction_type = jax.random.randint(keys[11], (BATCH, SEQ, SEQ), 0, N_IA_TYPES)
    interaction_matrix = jax.random.normal(keys[12], (BATCH, SEQ, SEQ, IA_FEAT_DIM), jnp.float32)
    res_mass_centor = jax.random.normal(keys[13], (BATCH, SEQ, 3), jnp.float32)    # unused
    distance_matrix = jax.random.normal(keys[14], (BATCH, SEQ, SEQ), jnp.float32)  # unused

    out, attn = mha_rope3d_bias_forward(
        params, input_Q, input_K, input_V, attn_mask, attn_if,
        interaction_type, interaction_matrix, res_mass_centor, distance_matrix)
    out = jax.block_until_ready(out)
    attn = jax.block_until_ready(attn)

    out_ref, attn_ref = reference_forward(
        params, input_Q, input_K, input_V, attn_mask, attn_if,
        interaction_type, interaction_matrix, res_mass_centor, distance_matrix)

    assert out.shape == (BATCH, SEQ, D_EMBED)
    assert attn.shape == (BATCH, N_HEADS, SEQ, SEQ)
    assert jnp.allclose(out, out_ref, atol=1e-4, rtol=1e-4)
    assert jnp.allclose(attn, attn_ref, atol=1e-5, rtol=1e-4)

    print("KERNEL_OK")
</pallas_src>

<mosaic_0001>
module attributes {stable_mosaic.version = 11 : i64} {
  func.func @_fused_mha_kernel(%arg0: i32, %arg1: memref<32x96xf32, #tpu.memory_space<vmem>>, %arg2: memref<96x96xf32, #tpu.memory_space<vmem>>, %arg3: memref<2x4x16x16xf32, #tpu.memory_space<vmem>>, %arg4: memref<2x16x16xf32, #tpu.memory_space<vmem>>, %arg5: memref<32x32xf32, #tpu.memory_space<vmem>>, %arg6: memref<1x32xf32, #tpu.memory_space<vmem>>, %arg7: memref<1x32xf32, #tpu.memory_space<vmem>>, %arg8: memref<32x32xf32, #tpu.memory_space<vmem>>, %arg9: memref<16x128xf32, #tpu.memory_space<vmem>>) attributes {dimension_semantics = [#tpu.dimension_semantics<arbitrary>], iteration_bounds = array<i64: 1>, scalar_prefetch = 0 : i64, scratch_operands = 0 : i64, tpu.core_type = #tpu.core_type<tc>, window_params = [{pipeline_mode = #tpu.pipeline_mode<synchronous>, transform_indices = @transform_0, window_bounds = array<i64: 32, 96>}, {pipeline_mode = #tpu.pipeline_mode<synchronous>, transform_indices = @transform_1, window_bounds = array<i64: 96, 96>}, {pipeline_mode = #tpu.pipeline_mode<synchronous>, transform_indices = @transform_2, window_bounds = array<i64: 2, 4, 16, 16>}, {pipeline_mode = #tpu.pipeline_mode<synchronous>, transform_indices = @transform_3, window_bounds = array<i64: 2, 16, 16>}, {pipeline_mode = #tpu.pipeline_mode<synchronous>, transform_indices = @transform_4, window_bounds = array<i64: 32, 32>}, {pipeline_mode = #tpu.pipeline_mode<synchronous>, transform_indices = @transform_5, window_bounds = array<i64: 1, 32>}, {pipeline_mode = #tpu.pipeline_mode<synchronous>, transform_indices = @transform_6, window_bounds = array<i64: 1, 32>}, {pipeline_mode = #tpu.pipeline_mode<synchronous>, transform_indices = @transform_7, window_bounds = array<i64: 32, 32>}, {pipeline_mode = #tpu.pipeline_mode<synchronous>, transform_indices = @transform_8, window_bounds = array<i64: 16, 128>}]} {
    %c0 = arith.constant 0 : index
    %c0_0 = arith.constant 0 : index
    %0 = vector.load %arg1[%c0, %c0_0] : memref<32x96xf32, #tpu.memory_space<vmem>>, vector<32x96xf32>
    %c0_1 = arith.constant 0 : index
    %c0_2 = arith.constant 0 : index
    %1 = vector.load %arg2[%c0_1, %c0_2] : memref<96x96xf32, #tpu.memory_space<vmem>>, vector<96x96xf32>
    %cst = arith.constant dense<0.000000e+00> : vector<32x96xf32>
    %2 = tpu.matmul %0, %1, %cst {dimension_numbers = #tpu.dot_dimension_numbers<[1], [0], [0], [1], [0, 0, 1, 1], [], []>} : vector<32x96xf32>, vector<96x96xf32>, vector<32x96xf32> -> vector<32x96xf32>
    %3 = vector.extract_strided_slice %2 {offsets = [0, 0], sizes = [32, 32], strides = [1, 1]} : vector<32x96xf32> to vector<32x32xf32>
    %4 = vector.extract_strided_slice %2 {offsets = [0, 32], sizes = [32, 32], strides = [1, 1]} : vector<32x96xf32> to vector<32x32xf32>
    %5 = vector.extract_strided_slice %2 {offsets = [0, 64], sizes = [32, 32], strides = [1, 1]} : vector<32x96xf32> to vector<32x32xf32>
    %6 = vector.extract_strided_slice %3 {offsets = [0, 0], sizes = [16, 32], strides = [1, 1]} : vector<32x32xf32> to vector<16x32xf32>
    %7 = vector.extract_strided_slice %4 {offsets = [0, 0], sizes = [16, 32], strides = [1, 1]} : vector<32x32xf32> to vector<16x32xf32>
    %8 = vector.extract_strided_slice %5 {offsets = [0, 0], sizes = [16, 32], strides = [1, 1]} : vector<32x32xf32> to vector<16x32xf32>
    %c0_3 = arith.constant 0 : index
    %c0_4 = arith.constant 0 : index
    %c0_5 = arith.constant 0 : index
    %9 = vector.load %arg4[%c0_3, %c0_4, %c0_5] : memref<2x16x16xf32, #tpu.memory_space<vmem>>, vector<1x16x16xf32>
    %10 = vector.shape_cast %9 : vector<1x16x16xf32> to vector<16x16xf32>
    %11 = vector.extract_strided_slice %6 {offsets = [0, 0], sizes = [16, 8], strides = [1, 1]} : vector<16x32xf32> to vector<16x8xf32>
    %12 = vector.extract_strided_slice %7 {offsets = [0, 0], sizes = [16, 8], strides = [1, 1]} : vector<16x32xf32> to vector<16x8xf32>
    %13 = vector.extract_strided_slice %8 {offsets = [0, 0], sizes = [16, 8], strides = [1, 1]} : vector<16x32xf32> to vector<16x8xf32>
    %cst_6 = arith.constant dense<0.000000e+00> : vector<16x16xf32>
    %14 = tpu.matmul %11, %12, %cst_6 {dimension_numbers = #tpu.dot_dimension_numbers<[1], [1], [0], [0], [0, 0, 1, 0], [], []>} : vector<16x8xf32>, vector<16x8xf32>, vector<16x16xf32> -> vector<16x16xf32>
    %15 = arith.mulf %14, %10 : vector<16x16xf32>
    %c0_7 = arith.constant 0 : index
    %c0_8 = arith.constant 0 : index
    %c0_9 = arith.constant 0 : index
    %c0_10 = arith.constant 0 : index
    %16 = vector.load %arg3[%c0_7, %c0_8, %c0_9, %c0_10] : memref<2x4x16x16xf32, #tpu.memory_space<vmem>>, vector<1x1x16x16xf32>
    %17 = vector.shape_cast %16 : vector<1x1x16x16xf32> to vector<16x16xf32>
    %18 = arith.addf %15, %17 : vector<16x16xf32>
    %cst_11 = arith.constant dense<0xFF800000> : vector<16xf32>
    %19 = vector.multi_reduction <maximumf>, %18, %cst_11 [1] : vector<16x16xf32> to vector<16xf32>
    %20 = vector.shape_cast %19 : vector<16xf32> to vector<16x1xf32>
    %21 = vector.broadcast %20 : vector<16x1xf32> to vector<16x16xf32>
    %22 = arith.subf %18, %21 : vector<16x16xf32>
    %23 = math.exp %22 : vector<16x16xf32>
    %cst_12 = arith.constant dense<0.000000e+00> : vector<16xf32>
    %24 = vector.multi_reduction <add>, %23, %cst_12 [1] : vector<16x16xf32> to vector<16xf32>
    %25 = vector.shape_cast %24 : vector<16xf32> to vector<16x1xf32>
    %26 = tpu.reciprocal %25 : vector<16x1xf32> -> vector<16x1xf32>
    %27 = vector.broadcast %26 : vector<16x1xf32> to vector<16x16xf32>
    %28 = arith.mulf %23, %27 : vector<16x16xf32>
    %cst_13 = arith.constant dense<0.000000e+00> : vector<16x8xf32>
    %29 = tpu.matmul %28, %13, %cst_13 {dimension_numbers = #tpu.dot_dimension_numbers<[1], [0], [0], [1], [0, 0, 1, 1], [], []>} : vector<16x16xf32>, vector<16x8xf32>, vector<16x8xf32> -> vector<16x8xf32>
    %30 = vector.extract_strided_slice %6 {offsets = [0, 8], sizes = [16, 8], strides = [1, 1]} : vector<16x32xf32> to vector<16x8xf32>
    %31 = vector.extract_strided_slice %7 {offsets = [0, 8], sizes = [16, 8], strides = [1, 1]} : vector<16x32xf32> to vector<16x8xf32>
    %32 = vector.extract_strided_slice %8 {offsets = [0, 8], sizes = [16, 8], strides = [1, 1]} : vector<16x32xf32> to vector<16x8xf32>
    %cst_14 = arith.constant dense<0.000000e+00> : vector<16x16xf32>
    %33 = tpu.matmul %30, %31, %cst_14 {dimension_numbers = #tpu.dot_dimension_numbers<[1], [1], [0], [0], [0, 0, 1, 0], [], []>} : vector<16x8xf32>, vector<16x8xf32>, vector<16x16xf32> -> vector<16x16xf32>
    %34 = arith.mulf %33, %10 : vector<16x16xf32>
    %c0_15 = arith.constant 0 : index
    %c1 = arith.constant 1 : index
    %c0_16 = arith.constant 0 : index
    %c0_17 = arith.constant 0 : index
    %35 = vector.load %arg3[%c0_15, %c1, %c0_16, %c0_17] : memref<2x4x16x16xf32, #tpu.memory_space<vmem>>, vector<1x1x16x16xf32>
    %36 = vector.shape_cast %35 : vector<1x1x16x16xf32> to vector<16x16xf32>
    %37 = arith.addf %34, %36 : vector<16x16xf32>
    %cst_18 = arith.constant dense<0xFF800000> : vector<16xf32>
    %38 = vector.multi_reduction <maximumf>, %37, %cst_18 [1] : vector<16x16xf32> to vector<16xf32>
    %39 = vector.shape_cast %38 : vector<16xf32> to vector<16x1xf32>
    %40 = vector.broadcast %39 : vector<16x1xf32> to vector<16x16xf32>
    %41 = arith.subf %37, %40 : vector<16x16xf32>
    %42 = math.exp %41 : vector<16x16xf32>
    %cst_19 = arith.constant dense<0.000000e+00> : vector<16xf32>
    %43 = vector.multi_reduction <add>, %42, %cst_19 [1] : vector<16x16xf32> to vector<16xf32>
    %44 = vector.shape_cast %43 : vector<16xf32> to vector<16x1xf32>
    %45 = tpu.reciprocal %44 : vector<16x1xf32> -> vector<16x1xf32>
    %46 = vector.broadcast %45 : vector<16x1xf32> to vector<16x16xf32>
    %47 = arith.mulf %42, %46 : vector<16x16xf32>
    %cst_20 = arith.constant dense<0.000000e+00> : vector<16x8xf32>
    %48 = tpu.matmul %47, %32, %cst_20 {dimension_numbers = #tpu.dot_dimension_numbers<[1], [0], [0], [1], [0, 0, 1, 1], [], []>} : vector<16x16xf32>, vector<16x8xf32>, vector<16x8xf32> -> vector<16x8xf32>
    %49 = vector.extract_strided_slice %6 {offsets = [0, 16], sizes = [16, 8], strides = [1, 1]} : vector<16x32xf32> to vector<16x8xf32>
    %50 = vector.extract_strided_slice %7 {offsets = [0, 16], sizes = [16, 8], strides = [1, 1]} : vector<16x32xf32> to vector<16x8xf32>
    %51 = vector.extract_strided_slice %8 {offsets = [0, 16], sizes = [16, 8], strides = [1, 1]} : vector<16x32xf32> to vector<16x8xf32>
    %cst_21 = arith.constant dense<0.000000e+00> : vector<16x16xf32>
    %52 = tpu.matmul %49, %50, %cst_21 {dimension_numbers = #tpu.dot_dimension_numbers<[1], [1], [0], [0], [0, 0, 1, 0], [], []>} : vector<16x8xf32>, vector<16x8xf32>, vector<16x16xf32> -> vector<16x16xf32>
    %53 = arith.mulf %52, %10 : vector<16x16xf32>
    %c0_22 = arith.constant 0 : index
    %c2 = arith.constant 2 : index
    %c0_23 = arith.constant 0 : index
    %c0_24 = arith.constant 0 : index
    %54 = vector.load %arg3[%c0_22, %c2, %c0_23, %c0_24] : memref<2x4x16x16xf32, #tpu.memory_space<vmem>>, vector<1x1x16x16xf32>
    %55 = vector.shape_cast %54 : vector<1x1x16x16xf32> to vector<16x16xf32>
    %56 = arith.addf %53, %55 : vector<16x16xf32>
    %cst_25 = arith.constant dense<0xFF800000> : vector<16xf32>
    %57 = vector.multi_reduction <maximumf>, %56, %cst_25 [1] : vector<16x16xf32> to vector<16xf32>
    %58 = vector.shape_cast %57 : vector<16xf32> to vector<16x1xf32>
    %59 = vector.broadcast %58 : vector<16x1xf32> to vector<16x16xf32>
    %60 = arith.subf %56, %59 : vector<16x16xf32>
    %61 = math.exp %60 : vector<16x16xf32>
    %cst_26 = arith.constant dense<0.000000e+00> : vector<16xf32>
    %62 = vector.multi_reduction <add>, %61, %cst_26 [1] : vector<16x16xf32> to vector<16xf32>
    %63 = vector.shape_cast %62 : vector<16xf32> to vector<16x1xf32>
    %64 = tpu.reciprocal %63 : vector<16x1xf32> -> vector<16x1xf32>
    %65 = vector.broadcast %64 : vector<16x1xf32> to vector<16x16xf32>
    %66 = arith.mulf %61, %65 : vector<16x16xf32>
    %cst_27 = arith.constant dense<0.000000e+00> : vector<16x8xf32>
    %67 = tpu.matmul %66, %51, %cst_27 {dimension_numbers = #tpu.dot_dimension_numbers<[1], [0], [0], [1], [0, 0, 1, 1], [], []>} : vector<16x16xf32>, vector<16x8xf32>, vector<16x8xf32> -> vector<16x8xf32>
    %68 = vector.extract_strided_slice %6 {offsets = [0, 24], sizes = [16, 8], strides = [1, 1]} : vector<16x32xf32> to vector<16x8xf32>
    %69 = vector.extract_strided_slice %7 {offsets = [0, 24], sizes = [16, 8], strides = [1, 1]} : vector<16x32xf32> to vector<16x8xf32>
    %70 = vector.extract_strided_slice %8 {offsets = [0, 24], sizes = [16, 8], strides = [1, 1]} : vector<16x32xf32> to vector<16x8xf32>
    %cst_28 = arith.constant dense<0.000000e+00> : vector<16x16xf32>
    %71 = tpu.matmul %68, %69, %cst_28 {dimension_numbers = #tpu.dot_dimension_numbers<[1], [1], [0], [0], [0, 0, 1, 0], [], []>} : vector<16x8xf32>, vector<16x8xf32>, vector<16x16xf32> -> vector<16x16xf32>
    %72 = arith.mulf %71, %10 : vector<16x16xf32>
    %c0_29 = arith.constant 0 : index
    %c3 = arith.constant 3 : index
    %c0_30 = arith.constant 0 : index
    %c0_31 = arith.constant 0 : index
    %73 = vector.load %arg3[%c0_29, %c3, %c0_30, %c0_31] : memref<2x4x16x16xf32, #tpu.memory_space<vmem>>, vector<1x1x16x16xf32>
    %74 = vector.shape_cast %73 : vector<1x1x16x16xf32> to vector<16x16xf32>
    %75 = arith.addf %72, %74 : vector<16x16xf32>
    %cst_32 = arith.constant dense<0xFF800000> : vector<16xf32>
    %76 = vector.multi_reduction <maximumf>, %75, %cst_32 [1] : vector<16x16xf32> to vector<16xf32>
    %77 = vector.shape_cast %76 : vector<16xf32> to vector<16x1xf32>
    %78 = vector.broadcast %77 : vector<16x1xf32> to vector<16x16xf32>
    %79 = arith.subf %75, %78 : vector<16x16xf32>
    %80 = math.exp %79 : vector<16x16xf32>
    %cst_33 = arith.constant dense<0.000000e+00> : vector<16xf32>
    %81 = vector.multi_reduction <add>, %80, %cst_33 [1] : vector<16x16xf32> to vector<16xf32>
    %82 = vector.shape_cast %81 : vector<16xf32> to vector<16x1xf32>
    %83 = tpu.reciprocal %82 : vector<16x1xf32> -> vector<16x1xf32>
    %84 = vector.broadcast %83 : vector<16x1xf32> to vector<16x16xf32>
    %85 = arith.mulf %80, %84 : vector<16x16xf32>
    %cst_34 = arith.constant dense<0.000000e+00> : vector<16x8xf32>
    %86 = tpu.matmul %85, %70, %cst_34 {dimension_numbers = #tpu.dot_dimension_numbers<[1], [0], [0], [1], [0, 0, 1, 1], [], []>} : vector<16x16xf32>, vector<16x8xf32>, vector<16x8xf32> -> vector<16x8xf32>
    %87 = tpu.concatenate %29, %48, %67, %86 in 1 : vector<16x8xf32>, vector<16x8xf32>, vector<16x8xf32>, vector<16x8xf32> -> vector<16x32xf32>
    %88 = vector.extract_strided_slice %3 {offsets = [16, 0], sizes = [16, 32], strides = [1, 1]} : vector<32x32xf32> to vector<16x32xf32>
    %89 = vector.extract_strided_slice %4 {offsets = [16, 0], sizes = [16, 32], strides = [1, 1]} : vector<32x32xf32> to vector<16x32xf32>
    %90 = vector.extract_strided_slice %5 {offsets = [16, 0], sizes = [16, 32], strides = [1, 1]} : vector<32x32xf32> to vector<16x32xf32>
    %c1_35 = arith.constant 1 : index
    %c0_36 = arith.constant 0 : index
    %c0_37 = arith.constant 0 : index
    %91 = vector.load %arg4[%c1_35, %c0_36, %c0_37] : memref<2x16x16xf32, #tpu.memory_space<vmem>>, vector<1x16x16xf32>
    %92 = vector.shape_cast %91 : vector<1x16x16xf32> to vector<16x16xf32>
    %93 = vector.extract_strided_slice %88 {offsets = [0, 0], sizes = [16, 8], strides = [1, 1]} : vector<16x32xf32> to vector<16x8xf32>
    %94 = vector.extract_strided_slice %89 {offsets = [0, 0], sizes = [16, 8], strides = [1, 1]} : vector<16x32xf32> to vector<16x8xf32>
    %95 = vector.extract_strided_slice %90 {offsets = [0, 0], sizes = [16, 8], strides = [1, 1]} : vector<16x32xf32> to vector<16x8xf32>
    %cst_38 = arith.constant dense<0.000000e+00> : vector<16x16xf32>
    %96 = tpu.matmul %93, %94, %cst_38 {dimension_numbers = #tpu.dot_dimension_numbers<[1], [1], [0], [0], [0, 0, 1, 0], [], []>} : vector<16x8xf32>, vector<16x8xf32>, vector<16x16xf32> -> vector<16x16xf32>
    %97 = arith.mulf %96, %92 : vector<16x16xf32>
    %c1_39 = arith.constant 1 : index
    %c0_40 = arith.constant 0 : index
    %c0_41 = arith.constant 0 : index
    %c0_42 = arith.constant 0 : index
    %98 = vector.load %arg3[%c1_39, %c0_40, %c0_41, %c0_42] : memref<2x4x16x16xf32, #tpu.memory_space<vmem>>, vector<1x1x16x16xf32>
    %99 = vector.shape_cast %98 : vector<1x1x16x16xf32> to vector<16x16xf32>
    %100 = arith.addf %97, %99 : vector<16x16xf32>
    %cst_43 = arith.constant dense<0xFF800000> : vector<16xf32>
    %101 = vector.multi_reduction <maximumf>, %100, %cst_43 [1] : vector<16x16xf32> to vector<16xf32>
    %102 = vector.shape_cast %101 : vector<16xf32> to vector<16x1xf32>
    %103 = vector.broadcast %102 : vector<16x1xf32> to vector<16x16xf32>
    %104 = arith.subf %100, %103 : vector<16x16xf32>
    %105 = math.exp %104 : vector<16x16xf32>
    %cst_44 = arith.constant dense<0.000000e+00> : vector<16xf32>
    %106 = vector.multi_reduction <add>, %105, %cst_44 [1] : vector<16x16xf32> to vector<16xf32>
    %107 = vector.shape_cast %106 : vector<16xf32> to vector<16x1xf32>
    %108 = tpu.reciprocal %107 : vector<16x1xf32> -> vector<16x1xf32>
    %109 = vector.broadcast %108 : vector<16x1xf32> to vector<16x16xf32>
    %110 = arith.mulf %105, %109 : vector<16x16xf32>
    %cst_45 = arith.constant dense<0.000000e+00> : vector<16x8xf32>
    %111 = tpu.matmul %110, %95, %cst_45 {dimension_numbers = #tpu.dot_dimension_numbers<[1], [0], [0], [1], [0, 0, 1, 1], [], []>} : vector<16x16xf32>, vector<16x8xf32>, vector<16x8xf32> -> vector<16x8xf32>
    %112 = vector.extract_strided_slice %88 {offsets = [0, 8], sizes = [16, 8], strides = [1, 1]} : vector<16x32xf32> to vector<16x8xf32>
    %113 = vector.extract_strided_slice %89 {offsets = [0, 8], sizes = [16, 8], strides = [1, 1]} : vector<16x32xf32> to vector<16x8xf32>
    %114 = vector.extract_strided_slice %90 {offsets = [0, 8], sizes = [16, 8], strides = [1, 1]} : vector<16x32xf32> to vector<16x8xf32>
    %cst_46 = arith.constant dense<0.000000e+00> : vector<16x16xf32>
    %115 = tpu.matmul %112, %113, %cst_46 {dimension_numbers = #tpu.dot_dimension_numbers<[1], [1], [0], [0], [0, 0, 1, 0], [], []>} : vector<16x8xf32>, vector<16x8xf32>, vector<16x16xf32> -> vector<16x16xf32>
    %116 = arith.mulf %115, %92 : vector<16x16xf32>
    %c1_47 = arith.constant 1 : index
    %c1_48 = arith.constant 1 : index
    %c0_49 = arith.constant 0 : index
    %c0_50 = arith.constant 0 : index
    %117 = vector.load %arg3[%c1_47, %c1_48, %c0_49, %c0_50] : memref<2x4x16x16xf32, #tpu.memory_space<vmem>>, vector<1x1x16x16xf32>
    %118 = vector.shape_cast %117 : vector<1x1x16x16xf32> to vector<16x16xf32>
    %119 = arith.addf %116, %118 : vector<16x16xf32>
    %cst_51 = arith.constant dense<0xFF800000> : vector<16xf32>
    %120 = vector.multi_reduction <maximumf>, %119, %cst_51 [1] : vector<16x16xf32> to vector<16xf32>
    %121 = vector.shape_cast %120 : vector<16xf32> to vector<16x1xf32>
    %122 = vector.broadcast %121 : vector<16x1xf32> to vector<16x16xf32>
    %123 = arith.subf %119, %122 : vector<16x16xf32>
    %124 = math.exp %123 : vector<16x16xf32>
    %cst_52 = arith.constant dense<0.000000e+00> : vector<16xf32>
    %125 = vector.multi_reduction <add>, %124, %cst_52 [1] : vector<16x16xf32> to vector<16xf32>
    %126 = vector.shape_cast %125 : vector<16xf32> to vector<16x1xf32>
    %127 = tpu.reciprocal %126 : vector<16x1xf32> -> vector<16x1xf32>
    %128 = vector.broadcast %127 : vector<16x1xf32> to vector<16x16xf32>
    %129 = arith.mulf %124, %128 : vector<16x16xf32>
    %cst_53 = arith.constant dense<0.000000e+00> : vector<16x8xf32>
    %130 = tpu.matmul %129, %114, %cst_53 {dimension_numbers = #tpu.dot_dimension_numbers<[1], [0], [0], [1], [0, 0, 1, 1], [], []>} : vector<16x16xf32>, vector<16x8xf32>, vector<16x8xf32> -> vector<16x8xf32>
    %131 = vector.extract_strided_slice %88 {offsets = [0, 16], sizes = [16, 8], strides = [1, 1]} : vector<16x32xf32> to vector<16x8xf32>
    %132 = vector.extract_strided_slice %89 {offsets = [0, 16], sizes = [16, 8], strides = [1, 1]} : vector<16x32xf32> to vector<16x8xf32>
    %133 = vector.extract_strided_slice %90 {offsets = [0, 16], sizes = [16, 8], strides = [1, 1]} : vector<16x32xf32> to vector<16x8xf32>
    %cst_54 = arith.constant dense<0.000000e+00> : vector<16x16xf32>
    %134 = tpu.matmul %131, %132, %cst_54 {dimension_numbers = #tpu.dot_dimension_numbers<[1], [1], [0], [0], [0, 0, 1, 0], [], []>} : vector<16x8xf32>, vector<16x8xf32>, vector<16x16xf32> -> vector<16x16xf32>
    %135 = arith.mulf %134, %92 : vector<16x16xf32>
    %c1_55 = arith.constant 1 : index
    %c2_56 = arith.constant 2 : index
    %c0_57 = arith.constant 0 : index
    %c0_58 = arith.constant 0 : index
    %136 = vector.load %arg3[%c1_55, %c2_56, %c0_57, %c0_58] : memref<2x4x16x16xf32, #tpu.memory_space<vmem>>, vector<1x1x16x16xf32>
    %137 = vector.shape_cast %136 : vector<1x1x16x16xf32> to vector<16x16xf32>
    %138 = arith.addf %135, %137 : vector<16x16xf32>
    %cst_59 = arith.constant dense<0xFF800000> : vector<16xf32>
    %139 = vector.multi_reduction <maximumf>, %138, %cst_59 [1] : vector<16x16xf32> to vector<16xf32>
    %140 = vector.shape_cast %139 : vector<16xf32> to vector<16x1xf32>
    %141 = vector.broadcast %140 : vector<16x1xf32> to vector<16x16xf32>
    %142 = arith.subf %138, %141 : vector<16x16xf32>
    %143 = math.exp %142 : vector<16x16xf32>
    %cst_60 = arith.constant dense<0.000000e+00> : vector<16xf32>
    %144 = vector.multi_reduction <add>, %143, %cst_60 [1] : vector<16x16xf32> to vector<16xf32>
    %145 = vector.shape_cast %144 : vector<16xf32> to vector<16x1xf32>
    %146 = tpu.reciprocal %145 : vector<16x1xf32> -> vector<16x1xf32>
    %147 = vector.broadcast %146 : vector<16x1xf32> to vector<16x16xf32>
    %148 = arith.mulf %143, %147 : vector<16x16xf32>
    %cst_61 = arith.constant dense<0.000000e+00> : vector<16x8xf32>
    %149 = tpu.matmul %148, %133, %cst_61 {dimension_numbers = #tpu.dot_dimension_numbers<[1], [0], [0], [1], [0, 0, 1, 1], [], []>} : vector<16x16xf32>, vector<16x8xf32>, vector<16x8xf32> -> vector<16x8xf32>
    %150 = vector.extract_strided_slice %88 {offsets = [0, 24], sizes = [16, 8], strides = [1, 1]} : vector<16x32xf32> to vector<16x8xf32>
    %151 = vector.extract_strided_slice %89 {offsets = [0, 24], sizes = [16, 8], strides = [1, 1]} : vector<16x32xf32> to vector<16x8xf32>
    %152 = vector.extract_strided_slice %90 {offsets = [0, 24], sizes = [16, 8], strides = [1, 1]} : vector<16x32xf32> to vector<16x8xf32>
    %cst_62 = arith.constant dense<0.000000e+00> : vector<16x16xf32>
    %153 = tpu.matmul %150, %151, %cst_62 {dimension_numbers = #tpu.dot_dimension_numbers<[1], [1], [0], [0], [0, 0, 1, 0], [], []>} : vector<16x8xf32>, vector<16x8xf32>, vector<16x16xf32> -> vector<16x16xf32>
    %154 = arith.mulf %153, %92 : vector<16x16xf32>
    %c1_63 = arith.constant 1 : index
    %c3_64 = arith.constant 3 : index
    %c0_65 = arith.constant 0 : index
    %c0_66 = arith.constant 0 : index
    %155 = vector.load %arg3[%c1_63, %c3_64, %c0_65, %c0_66] : memref<2x4x16x16xf32, #tpu.memory_space<vmem>>, vector<1x1x16x16xf32>
    %156 = vector.shape_cast %155 : vector<1x1x16x16xf32> to vector<16x16xf32>
    %157 = arith.addf %154, %156 : vector<16x16xf32>
    %cst_67 = arith.constant dense<0xFF800000> : vector<16xf32>
    %158 = vector.multi_reduction <maximumf>, %157, %cst_67 [1] : vector<16x16xf32> to vector<16xf32>
    %159 = vector.shape_cast %158 : vector<16xf32> to vector<16x1xf32>
    %160 = vector.broadcast %159 : vector<16x1xf32> to vector<16x16xf32>
    %161 = arith.subf %157, %160 : vector<16x16xf32>
    %162 = math.exp %161 : vector<16x16xf32>
    %cst_68 = arith.constant dense<0.000000e+00> : vector<16xf32>
    %163 = vector.multi_reduction <add>, %162, %cst_68 [1] : vector<16x16xf32> to vector<16xf32>
    %164 = vector.shape_cast %163 : vector<16xf32> to vector<16x1xf32>
    %165 = tpu.reciprocal %164 : vector<16x1xf32> -> vector<16x1xf32>
    %166 = vector.broadcast %165 : vector<16x1xf32> to vector<16x16xf32>
    %167 = arith.mulf %162, %166 : vector<16x16xf32>
    %cst_69 = arith.constant dense<0.000000e+00> : vector<16x8xf32>
    %168 = tpu.matmul %167, %152, %cst_69 {dimension_numbers = #tpu.dot_dimension_numbers<[1], [0], [0], [1], [0, 0, 1, 1], [], []>} : vector<16x16xf32>, vector<16x8xf32>, vector<16x8xf32> -> vector<16x8xf32>
    %169 = tpu.concatenate %111, %130, %149, %168 in 1 : vector<16x8xf32>, vector<16x8xf32>, vector<16x8xf32>, vector<16x8xf32> -> vector<16x32xf32>
    %170 = tpu.concatenate %87, %169 in 0 : vector<16x32xf32>, vector<16x32xf32> -> vector<32x32xf32>
    %171 = vector.extract_strided_slice %0 {offsets = [0, 0], sizes = [32, 32], strides = [1, 1]} : vector<32x96xf32> to vector<32x32xf32>
    %c0_70 = arith.constant 0 : index
    %c0_71 = arith.constant 0 : index
    %172 = vector.load %arg5[%c0_70, %c0_71] : memref<32x32xf32, #tpu.memory_space<vmem>>, vector<32x32xf32>
    %cst_72 = arith.constant dense<0.000000e+00> : vector<32x32xf32>
    %173 = tpu.matmul %170, %172, %cst_72 {dimension_numbers = #tpu.dot_dimension_numbers<[1], [0], [0], [1], [0, 0, 1, 1], [], []>} : vector<32x32xf32>, vector<32x32xf32>, vector<32x32xf32> -> vector<32x32xf32>
    %174 = arith.addf %171, %173 : vector<32x32xf32>
    %cst_73 = arith.constant dense<0.000000e+00> : vector<32xf32>
    %175 = vector.multi_reduction <add>, %174, %cst_73 [1] : vector<32x32xf32> to vector<32xf32>
    %176 = vector.shape_cast %175 : vector<32xf32> to vector<32x1xf32>
    %cst_74 = arith.constant 3.200000e+01 : f32
    %177 = vector.broadcast %cst_74 : f32 to vector<32x1xf32>
    %178 = arith.divf %176, %177 : vector<32x1xf32>
    %179 = vector.broadcast %178 : vector<32x1xf32> to vector<32x32xf32>
    %180 = arith.subf %174, %179 : vector<32x32xf32>
    %181 = arith.mulf %180, %180 : vector<32x32xf32>
    %cst_75 = arith.constant dense<0.000000e+00> : vector<32xf32>
    %182 = vector.multi_reduction <add>, %181, %cst_75 [1] : vector<32x32xf32> to vector<32xf32>
    %183 = vector.shape_cast %182 : vector<32xf32> to vector<32x1xf32>
    %cst_76 = arith.constant 3.200000e+01 : f32
    %184 = vector.broadcast %cst_76 : f32 to vector<32x1xf32>
    %185 = arith.divf %183, %184 : vector<32x1xf32>
    %186 = vector.broadcast %178 : vector<32x1xf32> to vector<32x32xf32>
    %187 = arith.subf %174, %186 : vector<32x32xf32>
    %cst_77 = arith.constant 9.99999974E-6 : f32
    %188 = vector.broadcast %cst_77 : f32 to vector<32x1xf32>
    %189 = arith.addf %185, %188 : vector<32x1xf32>
    %190 = math.rsqrt %189 : vector<32x1xf32>
    %191 = vector.broadcast %190 : vector<32x1xf32> to vector<32x32xf32>
    %192 = arith.mulf %187, %191 : vector<32x32xf32>
    %c0_78 = arith.constant 0 : index
    %c0_79 = arith.constant 0 : index
    %193 = vector.load %arg6[%c0_78, %c0_79] : memref<1x32xf32, #tpu.memory_space<vmem>>, vector<1x32xf32>
    %194 = vector.broadcast %193 : vector<1x32xf32> to vector<32x32xf32>
    %195 = arith.mulf %192, %194 : vector<32x32xf32>
    %c0_80 = arith.constant 0 : index
    %c0_81 = arith.constant 0 : index
    %196 = vector.load %arg7[%c0_80, %c0_81] : memref<1x32xf32, #tpu.memory_space<vmem>>, vector<1x32xf32>
    %197 = vector.broadcast %196 : vector<1x32xf32> to vector<32x32xf32>
    %198 = arith.addf %195, %197 : vector<32x32xf32>
    %c0_82 = arith.constant 0 : index
    %c0_83 = arith.constant 0 : index
    %199 = vector.load %arg8[%c0_82, %c0_83] : memref<32x32xf32, #tpu.memory_space<vmem>>, vector<32x32xf32>
    tpu.vector_store %arg8[%c0_82, %c0_83], %198 {strides = array<i32>} : memref<32x32xf32, #tpu.memory_space<vmem>>, vector<32x32xf32>,
    %200 = tpu.concatenate %28, %47, %66, %85, %110, %129, %148, %167 in 1 : vector<16x16xf32>, vector<16x16xf32>, vector<16x16xf32>, vector<16x16xf32>, vector<16x16xf32>, vector<16x16xf32>, vector<16x16xf32>, vector<16x16xf32> -> vector<16x128xf32>
    %c0_84 = arith.constant 0 : index
    %c0_85 = arith.constant 0 : index
    %201 = vector.load %arg9[%c0_84, %c0_85] : memref<16x128xf32, #tpu.memory_space<vmem>>, vector<16x128xf32>
    tpu.vector_store %arg9[%c0_84, %c0_85], %200 {strides = array<i32>} : memref<16x128xf32, #tpu.memory_space<vmem>>, vector<16x128xf32>,
    return
  }
  func.func @transform_0(%arg0: i32) -> (i32, i32) {
    %c0_i32 = arith.constant 0 : i32
    %c0_i32_0 = arith.constant 0 : i32
    %c0_i32_1 = arith.constant 0 : i32
    return %c0_i32, %c0_i32_0 : i32, i32
  }
  func.func @transform_1(%arg0: i32) -> (i32, i32) {
    %c0_i32 = arith.constant 0 : i32
    %c0_i32_0 = arith.constant 0 : i32
    %c0_i32_1 = arith.constant 0 : i32
    return %c0_i32, %c0_i32_0 : i32, i32
  }
  func.func @transform_2(%arg0: i32) -> (i32, i32, i32, i32) {
    %c0_i32 = arith.constant 0 : i32
    %c0_i32_0 = arith.constant 0 : i32
    %c0_i32_1 = arith.constant 0 : i32
    %c0_i32_2 = arith.constant 0 : i32
    %c0_i32_3 = arith.constant 0 : i32
    return %c0_i32, %c0_i32_0, %c0_i32_1, %c0_i32_2 : i32, i32, i32, i32
  }
  func.func @transform_3(%arg0: i32) -> (i32, i32, i32) {
    %c0_i32 = arith.constant 0 : i32
    %c0_i32_0 = arith.constant 0 : i32
    %c0_i32_1 = arith.constant 0 : i32
    %c0_i32_2 = arith.constant 0 : i32
    return %c0_i32, %c0_i32_0, %c0_i32_1 : i32, i32, i32
  }
  func.func @transform_4(%arg0: i32) -> (i32, i32) {
    %c0_i32 = arith.constant 0 : i32
    %c0_i32_0 = arith.constant 0 : i32
    %c0_i32_1 = arith.constant 0 : i32
    return %c0_i32, %c0_i32_0 : i32, i32
  }
  func.func @transform_5(%arg0: i32) -> (i32, i32) {
    %c0_i32 = arith.constant 0 : i32
    %c0_i32_0 = arith.constant 0 : i32
    %c0_i32_1 = arith.constant 0 : i32
    return %c0_i32, %c0_i32_0 : i32, i32
  }
  func.func @transform_6(%arg0: i32) -> (i32, i32) {
    %c0_i32 = arith.constant 0 : i32
    %c0_i32_0 = arith.constant 0 : i32
    %c0_i32_1 = arith.constant 0 : i32
    return %c0_i32, %c0_i32_0 : i32, i32
  }
  func.func @transform_7(%arg0: i32) -> (i32, i32) {
    %c0_i32 = arith.constant 0 : i32
    %c0_i32_0 = arith.constant 0 : i32
    %c0_i32_1 = arith.constant 0 : i32
    return %c0_i32, %c0_i32_0 : i32, i32
  }
  func.func @transform_8(%arg0: i32) -> (i32, i32) {
    %c0_i32 = arith.constant 0 : i32
    %c0_i32_0 = arith.constant 0 : i32
    %c0_i32_1 = arith.constant 0 : i32
    return %c0_i32, %c0_i32_0 : i32, i32
  }
}

</mosaic_0001>

<llo_original>
// kernel: mha_rope3d_bias_forward.1
$region0: #{mha_rope3d_bias_forward.1}
  #allocation0 [shape = 'u32[]', space=smem, size = 0x4, offset = 0x4, fixed_abs, tag = 'smem constant byte address 0x4 - core index']
  #allocation1 [shape = 'u32[72,128]{1,0:T(1,128)}', space=vmem, size = 0x9000, scoped, tag = 'internal scratch']
  %s0 = inlined_call_operand.vmem [shape: f32[32,96], index: 0, kind: input, shape index: {}]
  %s1 = inlined_call_operand.vmem [shape: f32[96,96], index: 1, kind: input, shape index: {}]
  %s2 = inlined_call_operand.vmem [shape: f32[2,4,16,16], index: 2, kind: input, shape index: {}]
  %s3 = inlined_call_operand.vmem [shape: f32[2,16,16], index: 3, kind: input, shape index: {}]
  %s4 = inlined_call_operand.vmem [shape: f32[32,32], index: 4, kind: input, shape index: {}]
  %s5 = inlined_call_operand.vmem [shape: f32[1,32], index: 5, kind: input, shape index: {}]
  %s6 = inlined_call_operand.vmem [shape: f32[1,32], index: 6, kind: input, shape index: {}]
  %s7 = inlined_call_operand.hbm [shape: f32[32,32], index: 7, kind: output, shape index: {0}]
  %s8 = inlined_call_operand.vmem [shape: f32[16,128], index: 8, kind: output, shape index: {1}]
  %9 = xla_tuple %s7, %s8
  %s10 = sld [smem:[#allocation0]]
  $region46: #{mha_rope3d_bias_forward.1} parent=0
    _
  %s12 = ssub.s32 1, %s10
  %s13 = scalar_select 0, %s12, %s10
  $region1: #{mha_rope3d_bias_forward.1} parent=0
    #allocation2 [shape = 'u8[16384]{0}', space=vmem, size = 0x4000, scoped, tag = 'output window, operand 0, single buffered']
    #allocation3 [shape = 's32[1]{0}', space=sflag, size = 0x4, scoped, tag = 'scoped memory for mha_rope3d_bias_forward.1']
    %14 = vsyncpa [#allocation3], 0
    // Predicated region
    $region2: #{mha_rope3d_bias_forward.1} parent=1 // pred_check
      _
    $region3: #{mha_rope3d_bias_forward.1} parent=1 // pred_check_branch
      %16 = sbr.rel (0) target = $region5
    $region4: #{mha_rope3d_bias_forward.1} parent=1 // pred_region
      _
    $region5: #{mha_rope3d_bias_forward.1} parent=1 // pred_fallthru
      _
    // Predicated region
    $region6: #{mha_rope3d_bias_forward.1} parent=1 // pred_check
      _
    $region7: #{mha_rope3d_bias_forward.1} parent=1 // pred_check_branch
      %18 = sbr.rel (0) target = $region9
    $region8: #{mha_rope3d_bias_forward.1} parent=1 // pred_region
      _
    $region9: #{mha_rope3d_bias_forward.1} parent=1 // pred_fallthru
      _
    // Predicated region
    $region10: #{mha_rope3d_bias_forward.1} parent=1 // pred_check
      _
    $region11: #{mha_rope3d_bias_forward.1} parent=1 // pred_check_branch
      %20 = sbr.rel (0) target = $region13
    $region12: #{mha_rope3d_bias_forward.1} parent=1 // pred_region
      _
    $region13: #{mha_rope3d_bias_forward.1} parent=1 // pred_fallthru
      _
    // Predicated region
    $region14: #{mha_rope3d_bias_forward.1} parent=1 // pred_check
      _
    $region15: #{mha_rope3d_bias_forward.1} parent=1 // pred_check_branch
      %22 = sbr.rel (0) target = $region17
    $region16: #{mha_rope3d_bias_forward.1} parent=1 // pred_region
      _
    $region17: #{mha_rope3d_bias_forward.1} parent=1 // pred_fallthru
      _
    // Predicated region
    $region18: #{mha_rope3d_bias_forward.1} parent=1 // pred_check
      _
    $region19: #{mha_rope3d_bias_forward.1} parent=1 // pred_check_branch
      %24 = sbr.rel (0) target = $region21
    $region20: #{mha_rope3d_bias_forward.1} parent=1 // pred_region
      _
    $region21: #{mha_rope3d_bias_forward.1} parent=1 // pred_fallthru
      _
    // Predicated region
    $region22: #{mha_rope3d_bias_forward.1} parent=1 // pred_check
      _
    $region23: #{mha_rope3d_bias_forward.1} parent=1 // pred_check_branch
      %26 = sbr.rel (0) target = $region25
    $region24: #{mha_rope3d_bias_forward.1} parent=1 // pred_region
      _
    $region25: #{mha_rope3d_bias_forward.1} parent=1 // pred_fallthru
      _
    // Predicated region
    $region26: #{mha_rope3d_bias_forward.1} parent=1 // pred_check
      _
    $region27: #{mha_rope3d_bias_forward.1} parent=1 // pred_check_branch
      %28 = sbr.rel (0) target = $region29
    $region28: #{mha_rope3d_bias_forward.1} parent=1 // pred_region
      _
    $region29: #{mha_rope3d_bias_forward.1} parent=1 // pred_fallthru
      _
    %v29 = vld [vmem:[%s0] sm:$0xff]
    %v30 = vld [vmem:[%s0 + $0x8] sm:$0xff]
    %v31 = vld [vmem:[%s0 + $0x10] sm:$0xff]
    %v32 = vld [vmem:[%s0 + $0x18] sm:$0xff]
    %v33 = vld [vmem:[%s1] sm:$0xff]
    %v34 = vld [vmem:[%s1 + $0x8] sm:$0xff]
    %v35 = vld [vmem:[%s1 + $0x10] sm:$0xff]
    %v36 = vld [vmem:[%s1 + $0x18] sm:$0xff]
    %v37 = vld [vmem:[%s1 + $0x20] sm:$0xff]
    %v38 = vld [vmem:[%s1 + $0x28] sm:$0xff]
    %v39 = vld [vmem:[%s1 + $0x30] sm:$0xff]
    %v40 = vld [vmem:[%s1 + $0x38] sm:$0xff]
    %v41 = vld [vmem:[%s1 + $0x40] sm:$0xff]
    %v42 = vld [vmem:[%s1 + $0x48] sm:$0xff]
    %v43 = vld [vmem:[%s1 + $0x50] sm:$0xff]
    %v44 = vld [vmem:[%s1 + $0x58] sm:$0xff]
    %vm45 = vcmask 785408
    %v47 = vsel %vm45, %v29, 0
    %v50 = vsel %vm45, %v30, 0
    %v53 = vsel %vm45, %v31, 0
    %v56 = vsel %vm45, %v32, 0
    %58 = vmatpush.msra.mxu0 0.0
    %59 = vmatpush.msra.mxu0 0.0
    %60 = vmatpush.msra.mxu0 0.0
    %61 = vmatpush.msra.mxu0 0.0
    %62 = vmatpush.msra.mxu0 %v44
    %63 = vmatpush.msra.mxu0 %v43
    %64 = vmatpush.msra.mxu0 %v42
    %65 = vmatpush.msra.mxu0 %v41
    %66 = vmatpush.msra.mxu0 %v40
    %67 = vmatpush.msra.mxu0 %v39
    %68 = vmatpush.msra.mxu0 %v38
    %69 = vmatpush.msra.mxu0 %v37
    %70 = vmatpush.msra.mxu0 %v36
    %71 = vmatpush.msra.mxu0 %v35
    %72 = vmatpush.msra.mxu0 %v34
    %73 = vmatpush.msra.mxu0 %v33
    %74 = vmatmul.f32.gmra.mxu0 %v47
    %v75 = vpop.f32.mrf.mxu0
    %v76 = vadd.f32 0.0, %v75
    %77 = vmatmul.f32.gmra.mxu0 %v50
    %v78 = vpop.f32.mrf.mxu0
    %v79 = vadd.f32 0.0, %v78
    %80 = vmatmul.f32.gmra.mxu0 %v53
    %v81 = vpop.f32.mrf.mxu0
    %v82 = vadd.f32 0.0, %v81
    %83 = vmatmul.f32.gmra.mxu0 %v56
    %v84 = vpop.f32.mrf.mxu0
    %v85 = vadd.f32 0.0, %v84
    %86 = vdwg.mxu0
    %v87 = vld [vmem:[%s3] sm:$0xff]
    %v88 = vld [vmem:[%s3 + $0x8] sm:$0xff]
    %91 = vrot.lane.b32.xlu0 %v76, 96
    %v92 = vpop.permute.xlu0 %91
    %93 = vrot.lane.b32.xlu0 %v79, 96
    %v94 = vpop.permute.xlu0 %93
    %vm95 = vcmask 64512
    %v96 = vsel %vm95, %v76, 0
    %v98 = vsel %vm95, %v79, 0
    %v100 = vsel %vm95, %v92, 0
    %v102 = vsel %vm95, %v94, 0
    %104 = vmatpush.xpose.msra.mxu0 0.0
    %105 = vmatpush.xpose.msra.mxu0 0.0
    %106 = vmatpush.xpose.msra.mxu0 0.0
    %107 = vmatpush.xpose.msra.mxu0 0.0
    %108 = vmatpush.xpose.msra.mxu0 0.0
    %109 = vmatpush.xpose.msra.mxu0 0.0
    %110 = vmatpush.xpose.msra.mxu0 0.0
    %111 = vmatpush.xpose.msra.mxu0 0.0
    %112 = vmatpush.xpose.msra.mxu0 0.0
    %113 = vmatpush.xpose.msra.mxu0 0.0
    %114 = vmatpush.xpose.msra.mxu0 0.0
    %115 = vmatpush.xpose.msra.mxu0 0.0
    %116 = vmatpush.xpose.msra.mxu0 0.0
    %117 = vmatpush.xpose.msra.mxu0 0.0
    %118 = vmatpush.xpose.msra.mxu0 %v102
    %119 = vmatpush.xpose.msra.mxu0 %v100
    %120 = vmatmul.f32.gmra.mxu0 %v96
    %v121 = vpop.f32.mrf.mxu0
    %v122 = vadd.f32 0.0, %v121
    %123 = vmatmul.f32.gmra.mxu0 %v98
    %v124 = vpop.f32.mrf.mxu0
    %v125 = vadd.f32 0.0, %v124
    %126 = vdwg.mxu0
    %v127 = vmul.f32 %v122, %v87
    %v128 = vmul.f32 %v125, %v88
    %v129 = vld [vmem:[%s2] sm:$0xff]
    %v130 = vld [vmem:[%s2 + $0x8] sm:$0xff]
    %v131 = vadd.f32 %v127, %v129
    %v132 = vadd.f32 %v128, %v130
    %vm133 = vcmask 130048
    %v134 = vsel %vm133, %v131, -inf
    %135 = vmax.xlane.f32.xlu0 %v134
    %v136 = vpop.xlane.xlu0 %135
    %v137 = vsel %vm133, %v132, -inf
    %138 = vmax.xlane.f32.xlu0 %v137
    %v139 = vpop.xlane.xlu0 %138
    %v140 = vsub.f32 %v131, %v136
    %v141 = vsub.f32 %v132, %v139
    %v142 = vmul.f32 %v140, 1.442695
    %v143 = vpow.pop %v142
    %v144 = vmul.f32 %v141, 1.442695
    %v145 = vpow.pop %v144
    %v146 = vsel %vm133, %v143, 0.0
    %147 = vadd.xlane.f32.xlu0 %v146
    %v148 = vpop.xlane.xlu0 %147
    %v149 = vsel %vm133, %v145, 0.0
    %150 = vadd.xlane.f32.xlu0 %v149
    %v151 = vpop.xlane.xlu0 %150
    %v152 = vrcp.pop %v148
    %v153 = vmul.f32 %v148, %v152
    %v154 = vsub.f32 1.0, %v153
    %v155 = vmul.f32 %v152, %v154
    %v156 = vadd.f32 %v152, %v155
    %vm157 = vweird.f32 %v148
    %vm158 = vweird.f32 %v152
    %vm159 = vmor %vm157, %vm158
    %v160 = vsel %vm159, %v152, %v156
    %v161 = vand.u32 2147483647, %v148
    %vm162 = vcmp.eq.f32.partialorder %v161, 8.507059e+37
    %v163 = vand.u32 %v148, 2147483648
    %v164 = vor.u32 1.1754944e-38, %v163
    %v165 = vsel %vm162, %v164, %v160
    %v166 = vrcp.pop %v151
    %v167 = vmul.f32 %v151, %v166
    %v168 = vsub.f32 1.0, %v167
    %v169 = vmul.f32 %v166, %v168
    %v170 = vadd.f32 %v166, %v169
    %vm171 = vweird.f32 %v151
    %vm172 = vweird.f32 %v166
    %vm173 = vmor %vm171, %vm172
    %v174 = vsel %vm173, %v166, %v170
    %v175 = vand.u32 2147483647, %v151
    %vm176 = vcmp.eq.f32.partialorder %v175, 8.507059e+37
    %v177 = vand.u32 %v151, 2147483648
    %v178 = vor.u32 1.1754944e-38, %v177
    %v179 = vsel %vm176, %v178, %v174
    %v180 = vmul.f32 %v143, %v165
    %v181 = vmul.f32 %v145, %v179
    %182 = vrot.lane.b32.xlu0 %v76, 64
    %v183 = vpop.permute.xlu0 %182
    %184 = vrot.lane.b32.xlu0 %v79, 64
    %v185 = vpop.permute.xlu0 %184
    %v189 = vsel %vm133, %v180, 0
    %v192 = vsel %vm133, %v181, 0
    %194 = vmatpush.msra.mxu0 0.0
    %195 = vmatpush.msra.mxu0 0.0
    %196 = vmatpush.msra.mxu0 0.0
    %197 = vmatpush.msra.mxu0 0.0
    %198 = vmatpush.msra.mxu0 0.0
    %199 = vmatpush.msra.mxu0 0.0
    %200 = vmatpush.msra.mxu0 0.0
    %201 = vmatpush.msra.mxu0 0.0
    %202 = vmatpush.msra.mxu0 0.0
    %203 = vmatpush.msra.mxu0 0.0
    %204 = vmatpush.msra.mxu0 0.0
    %205 = vmatpush.msra.mxu0 0.0
    %206 = vmatpush.msra.mxu0 0.0
    %207 = vmatpush.msra.mxu0 0.0
    %208 = vmatpush.msra.mxu0 %v185
    %209 = vmatpush.msra.mxu0 %v183
    %210 = vmatmul.f32.gmra.mxu0 %v189
    %v211 = vpop.f32.mrf.mxu0
    %v212 = vadd.f32 0.0, %v211
    %213 = vmatmul.f32.gmra.mxu0 %v192
    %v214 = vpop.f32.mrf.mxu0
    %v215 = vadd.f32 0.0, %v214
    %216 = vdwg.mxu0
    %217 = vrot.lane.b32.xlu0 %v76, 120
    %v218 = vpop.permute.xlu0 %217
    %219 = vrot.lane.b32.xlu0 %v79, 120
    %v220 = vpop.permute.xlu0 %219
    %221 = vrot.lane.b32.xlu0 %v76, 88
    %v222 = vpop.permute.xlu0 %221
    %223 = vrot.lane.b32.xlu0 %v79, 88
    %v224 = vpop.permute.xlu0 %223
    %v225 = vsel %vm95, %v218, 0
    %v227 = vsel %vm95, %v220, 0
    %v229 = vsel %vm95, %v222, 0
    %v231 = vsel %vm95, %v224, 0
    %233 = vmatpush.xpose.msra.mxu0 0.0
    %234 = vmatpush.xpose.msra.mxu0 0.0
    %235 = vmatpush.xpose.msra.mxu0 0.0
    %236 = vmatpush.xpose.msra.mxu0 0.0
    %237 = vmatpush.xpose.msra.mxu0 0.0
    %238 = vmatpush.xpose.msra.mxu0 0.0
    %239 = vmatpush.xpose.msra.mxu0 0.0
    %240 = vmatpush.xpose.msra.mxu0 0.0
    %241 = vmatpush.xpose.msra.mxu0 0.0
    %242 = vmatpush.xpose.msra.mxu0 0.0
    %243 = vmatpush.xpose.msra.mxu0 0.0
    %244 = vmatpush.xpose.msra.mxu0 0.0
    %245 = vmatpush.xpose.msra.mxu0 0.0
    %246 = vmatpush.xpose.msra.mxu0 0.0
    %247 = vmatpush.xpose.msra.mxu0 %v231
    %248 = vmatpush.xpose.msra.mxu0 %v229
    %249 = vmatmul.f32.gmra.mxu0 %v225
    %v250 = vpop.f32.mrf.mxu0
    %v251 = vadd.f32 0.0, %v250
    %252 = vmatmul.f32.gmra.mxu0 %v227
    %v253 = vpop.f32.mrf.mxu0
    %v254 = vadd.f32 0.0, %v253
    %255 = vdwg.mxu0
    %v256 = vmul.f32 %v251, %v87
    %v257 = vmul.f32 %v254, %v88
    %s258 = scalar_lea.vmem %s2, 16
    %v259 = vld [vmem:[%s258] sm:$0xff]
    %v260 = vld [vmem:[%s258 + $0x8] sm:$0xff]
    %v261 = vadd.f32 %v256, %v259
    %v262 = vadd.f32 %v257, %v260
    %v263 = vsel %vm133, %v261, -inf
    %264 = vmax.xlane.f32.xlu0 %v263
    %v265 = vpop.xlane.xlu0 %264
    %v266 = vsel %vm133, %v262, -inf
    %267 = vmax.xlane.f32.xlu0 %v266
    %v268 = vpop.xlane.xlu0 %267
    %v269 = vsub.f32 %v261, %v265
    %v270 = vsub.f32 %v262, %v268
    %v271 = vmul.f32 %v269, 1.442695
    %v272 = vpow.pop %v271
    %v273 = vmul.f32 %v270, 1.442695
    %v274 = vpow.pop %v273
    %v275 = vsel %vm133, %v272, 0.0
    %276 = vadd.xlane.f32.xlu0 %v275
    %v277 = vpop.xlane.xlu0 %276
    %v278 = vsel %vm133, %v274, 0.0
    %279 = vadd.xlane.f32.xlu0 %v278
    %v280 = vpop.xlane.xlu0 %279
    %v281 = vrcp.pop %v277
    %v282 = vmul.f32 %v277, %v281
    %v283 = vsub.f32 1.0, %v282
    %v284 = vmul.f32 %v281, %v283
    %v285 = vadd.f32 %v281, %v284
    %vm286 = vweird.f32 %v277
    %vm287 = vweird.f32 %v281
    %vm288 = vmor %vm286, %vm287
    %v289 = vsel %vm288, %v281, %v285
    %v290 = vand.u32 2147483647, %v277
    %vm291 = vcmp.eq.f32.partialorder %v290, 8.507059e+37
    %v292 = vand.u32 %v277, 2147483648
    %v293 = vor.u32 1.1754944e-38, %v292
    %v294 = vsel %vm291, %v293, %v289
    %v295 = vrcp.pop %v280
    %v296 = vmul.f32 %v280, %v295
    %v297 = vsub.f32 1.0, %v296
    %v298 = vmul.f32 %v295, %v297
    %v299 = vadd.f32 %v295, %v298
    %vm300 = vweird.f32 %v280
    %vm301 = vweird.f32 %v295
    %vm302 = vmor %vm300, %vm301
    %v303 = vsel %vm302, %v295, %v299
    %v304 = vand.u32 2147483647, %v280
    %vm305 = vcmp.eq.f32.partialorder %v304, 8.507059e+37
    %v306 = vand.u32 %v280, 2147483648
    %v307 = vor.u32 1.1754944e-38, %v306
    %v308 = vsel %vm305, %v307, %v303
    %v309 = vmul.f32 %v272, %v294
    %v310 = vmul.f32 %v274, %v308
    %311 = vrot.lane.b32.xlu0 %v76, 56
    %v312 = vpop.permute.xlu0 %311
    %313 = vrot.lane.b32.xlu0 %v79, 56
    %v314 = vpop.permute.xlu0 %313
    %v318 = vsel %vm133, %v309, 0
    %v321 = vsel %vm133, %v310, 0
    %323 = vmatpush.msra.mxu0 0.0
    %324 = vmatpush.msra.mxu0 0.0
    %325 = vmatpush.msra.mxu0 0.0
    %326 = vmatpush.msra.mxu0 0.0
    %327 = vmatpush.msra.mxu0 0.0
    %328 = vmatpush.msra.mxu0 0.0
    %329 = vmatpush.msra.mxu0 0.0
    %330 = vmatpush.msra.mxu0 0.0
    %331 = vmatpush.msra.mxu0 0.0
    %332 = vmatpush.msra.mxu0 0.0
    %333 = vmatpush.msra.mxu0 0.0
    %334 = vmatpush.msra.mxu0 0.0
    %335 = vmatpush.msra.mxu0 0.0
    %336 = vmatpush.msra.mxu0 0.0
    %337 = vmatpush.msra.mxu0 %v314
    %338 = vmatpush.msra.mxu0 %v312
    %339 = vmatmul.f32.gmra.mxu0 %v318
    %v340 = vpop.f32.mrf.mxu0
    %v341 = vadd.f32 0.0, %v340
    %342 = vmatmul.f32.gmra.mxu0 %v321
    %v343 = vpop.f32.mrf.mxu0
    %v344 = vadd.f32 0.0, %v343
    %345 = vdwg.mxu0
    %346 = vrot.lane.b32.xlu0 %v76, 112
    %v347 = vpop.permute.xlu0 %346
    %348 = vrot.lane.b32.xlu0 %v79, 112
    %v349 = vpop.permute.xlu0 %348
    %350 = vrot.lane.b32.xlu0 %v76, 80
    %v351 = vpop.permute.xlu0 %350
    %352 = vrot.lane.b32.xlu0 %v79, 80
    %v353 = vpop.permute.xlu0 %352
    %v354 = vsel %vm95, %v347, 0
    %v356 = vsel %vm95, %v349, 0
    %v358 = vsel %vm95, %v351, 0
    %v360 = vsel %vm95, %v353, 0
    %362 = vmatpush.xpose.msra.mxu0 0.0
    %363 = vmatpush.xpose.msra.mxu0 0.0
    %364 = vmatpush.xpose.msra.mxu0 0.0
    %365 = vmatpush.xpose.msra.mxu0 0.0
    %366 = vmatpush.xpose.msra.mxu0 0.0
    %367 = vmatpush.xpose.msra.mxu0 0.0
    %368 = vmatpush.xpose.msra.mxu0 0.0
    %369 = vmatpush.xpose.msra.mxu0 0.0
    %370 = vmatpush.xpose.msra.mxu0 0.0
    %371 = vmatpush.xpose.msra.mxu0 0.0
    %372 = vmatpush.xpose.msra.mxu0 0.0
    %373 = vmatpush.xpose.msra.mxu0 0.0
    %374 = vmatpush.xpose.msra.mxu0 0.0
    %375 = vmatpush.xpose.msra.mxu0 0.0
    %376 = vmatpush.xpose.msra.mxu0 %v360
    %377 = vmatpush.xpose.msra.mxu0 %v358
    %378 = vmatmul.f32.gmra.mxu0 %v354
    %v379 = vpop.f32.mrf.mxu0
    %v380 = vadd.f32 0.0, %v379
    %381 = vmatmul.f32.gmra.mxu0 %v356
    %v382 = vpop.f32.mrf.mxu0
    %v383 = vadd.f32 0.0, %v382
    %384 = vdwg.mxu0
    %v385 = vmul.f32 %v380, %v87
    %v386 = vmul.f32 %v383, %v88
    %s387 = scalar_lea.vmem %s2, 32
    %v388 = vld [vmem:[%s387] sm:$0xff]
    %v389 = vld [vmem:[%s387 + $0x8] sm:$0xff]
    %v390 = vadd.f32 %v385, %v388
    %v391 = vadd.f32 %v386, %v389
    %v392 = vsel %vm133, %v390, -inf
    %393 = vmax.xlane.f32.xlu0 %v392
    %v394 = vpop.xlane.xlu0 %393
    %v395 = vsel %vm133, %v391, -inf
    %396 = vmax.xlane.f32.xlu0 %v395
    %v397 = vpop.xlane.xlu0 %396
    %v398 = vsub.f32 %v390, %v394
    %v399 = vsub.f32 %v391, %v397
    %v400 = vmul.f32 %v398, 1.442695
    %v401 = vpow.pop %v400
    %v402 = vmul.f32 %v399, 1.442695
    %v403 = vpow.pop %v402
    %v404 = vsel %vm133, %v401, 0.0
    %405 = vadd.xlane.f32.xlu0 %v404
    %v406 = vpop.xlane.xlu0 %405
    %v407 = vsel %vm133, %v403, 0.0
    %408 = vadd.xlane.f32.xlu0 %v407
    %v409 = vpop.xlane.xlu0 %408
    %v410 = vrcp.pop %v406
    %v411 = vmul.f32 %v406, %v410
    %v412 = vsub.f32 1.0, %v411
    %v413 = vmul.f32 %v410, %v412
    %v414 = vadd.f32 %v410, %v413
    %vm415 = vweird.f32 %v406
    %vm416 = vweird.f32 %v410
    %vm417 = vmor %vm415, %vm416
    %v418 = vsel %vm417, %v410, %v414
    %v419 = vand.u32 2147483647, %v406
    %vm420 = vcmp.eq.f32.partialorder %v419, 8.507059e+37
    %v421 = vand.u32 %v406, 2147483648
    %v422 = vor.u32 1.1754944e-38, %v421
    %v423 = vsel %vm420, %v422, %v418
    %v424 = vrcp.pop %v409
    %v425 = vmul.f32 %v409, %v424
    %v426 = vsub.f32 1.0, %v425
    %v427 = vmul.f32 %v424, %v426
    %v428 = vadd.f32 %v424, %v427
    %vm429 = vweird.f32 %v409
    %vm430 = vweird.f32 %v424
    %vm431 = vmor %vm429, %vm430
    %v432 = vsel %vm431, %v424, %v428
    %v433 = vand.u32 2147483647, %v409
    %vm434 = vcmp.eq.f32.partialorder %v433, 8.507059e+37
    %v435 = vand.u32 %v409, 2147483648
    %v436 = vor.u32 1.1754944e-38, %v435
    %v437 = vsel %vm434, %v436, %v432
    %v438 = vmul.f32 %v401, %v423
    %v439 = vmul.f32 %v403, %v437
    %440 = vrot.lane.b32.xlu0 %v76, 48
    %v441 = vpop.permute.xlu0 %440
    %442 = vrot.lane.b32.xlu0 %v79, 48
    %v443 = vpop.permute.xlu0 %442
    %v447 = vsel %vm133, %v438, 0
    %v450 = vsel %vm133, %v439, 0
    %452 = vmatpush.msra.mxu0 0.0
    %453 = vmatpush.msra.mxu0 0.0
    %454 = vmatpush.msra.mxu0 0.0
    %455 = vmatpush.msra.mxu0 0.0
    %456 = vmatpush.msra.mxu0 0.0
    %457 = vmatpush.msra.mxu0 0.0
    %458 = vmatpush.msra.mxu0 0.0
    %459 = vmatpush.msra.mxu0 0.0
    %460 = vmatpush.msra.mxu0 0.0
    %461 = vmatpush.msra.mxu0 0.0
    %462 = vmatpush.msra.mxu0 0.0
    %463 = vmatpush.msra.mxu0 0.0
    %464 = vmatpush.msra.mxu0 0.0
    %465 = vmatpush.msra.mxu0 0.0
    %466 = vmatpush.msra.mxu0 %v443
    %467 = vmatpush.msra.mxu0 %v441
    %468 = vmatmul.f32.gmra.mxu0 %v447
    %v469 = vpop.f32.mrf.mxu0
    %v470 = vadd.f32 0.0, %v469
    %471 = vmatmul.f32.gmra.mxu0 %v450
    %v472 = vpop.f32.mrf.mxu0
    %v473 = vadd.f32 0.0, %v472
    %474 = vdwg.mxu0
    %475 = vrot.lane.b32.xlu0 %v76, 104
    %v476 = vpop.permute.xlu0 %475
    %477 = vrot.lane.b32.xlu0 %v79, 104
    %v478 = vpop.permute.xlu0 %477
    %479 = vrot.lane.b32.xlu0 %v76, 72
    %v480 = vpop.permute.xlu0 %479
    %481 = vrot.lane.b32.xlu0 %v79, 72
    %v482 = vpop.permute.xlu0 %481
    %v483 = vsel %vm95, %v476, 0
    %v485 = vsel %vm95, %v478, 0
    %v487 = vsel %vm95, %v480, 0
    %v489 = vsel %vm95, %v482, 0
    %491 = vmatpush.xpose.msra.mxu0 0.0
    %492 = vmatpush.xpose.msra.mxu0 0.0
    %493 = vmatpush.xpose.msra.mxu0 0.0
    %494 = vmatpush.xpose.msra.mxu0 0.0
    %495 = vmatpush.xpose.msra.mxu0 0.0
    %496 = vmatpush.xpose.msra.mxu0 0.0
    %497 = vmatpush.xpose.msra.mxu0 0.0
    %498 = vmatpush.xpose.msra.mxu0 0.0
    %499 = vmatpush.xpose.msra.mxu0 0.0
    %500 = vmatpush.xpose.msra.mxu0 0.0
    %501 = vmatpush.xpose.msra.mxu0 0.0
    %502 = vmatpush.xpose.msra.mxu0 0.0
    %503 = vmatpush.xpose.msra.mxu0 0.0
    %504 = vmatpush.xpose.msra.mxu0 0.0
    %505 = vmatpush.xpose.msra.mxu0 %v489
    %506 = vmatpush.xpose.msra.mxu0 %v487
    %507 = vmatmul.f32.gmra.mxu0 %v483
    %v508 = vpop.f32.mrf.mxu0
    %v509 = vadd.f32 0.0, %v508
    %510 = vmatmul.f32.gmra.mxu0 %v485
    %v511 = vpop.f32.mrf.mxu0
    %v512 = vadd.f32 0.0, %v511
    %513 = vdwg.mxu0
    %v514 = vmul.f32 %v509, %v87
    %v515 = vmul.f32 %v512, %v88
    %s516 = scalar_lea.vmem %s2, 48
    %v517 = vld [vmem:[%s516] sm:$0xff]
    %v518 = vld [vmem:[%s516 + $0x8] sm:$0xff]
    %v519 = vadd.f32 %v514, %v517
    %v520 = vadd.f32 %v515, %v518
    %v521 = vsel %vm133, %v519, -inf
    %522 = vmax.xlane.f32.xlu0 %v521
    %v523 = vpop.xlane.xlu0 %522
    %v524 = vsel %vm133, %v520, -inf
    %525 = vmax.xlane.f32.xlu0 %v524
    %v526 = vpop.xlane.xlu0 %525
    %v527 = vsub.f32 %v519, %v523
    %v528 = vsub.f32 %v520, %v526
    %v529 = vmul.f32 %v527, 1.442695
    %v530 = vpow.pop %v529
    %v531 = vmul.f32 %v528, 1.442695
    %v532 = vpow.pop %v531
    %v533 = vsel %vm133, %v530, 0.0
    %534 = vadd.xlane.f32.xlu0 %v533
    %v535 = vpop.xlane.xlu0 %534
    %v536 = vsel %vm133, %v532, 0.0
    %537 = vadd.xlane.f32.xlu0 %v536
    %v538 = vpop.xlane.xlu0 %537
    %v539 = vrcp.pop %v535
    %v540 = vmul.f32 %v535, %v539
    %v541 = vsub.f32 1.0, %v540
    %v542 = vmul.f32 %v539, %v541
    %v543 = vadd.f32 %v539, %v542
    %vm544 = vweird.f32 %v535
    %vm545 = vweird.f32 %v539
    %vm546 = vmor %vm544, %vm545
    %v547 = vsel %vm546, %v539, %v543
    %v548 = vand.u32 2147483647, %v535
    %vm549 = vcmp.eq.f32.partialorder %v548, 8.507059e+37
    %v550 = vand.u32 %v535, 2147483648
    %v551 = vor.u32 1.1754944e-38, %v550
    %v552 = vsel %vm549, %v551, %v547
    %v553 = vrcp.pop %v538
    %v554 = vmul.f32 %v538, %v553
    %v555 = vsub.f32 1.0, %v554
    %v556 = vmul.f32 %v553, %v555
    %v557 = vadd.f32 %v553, %v556
    %vm558 = vweird.f32 %v538
    %vm559 = vweird.f32 %v553
    %vm560 = vmor %vm558, %vm559
    %v561 = vsel %vm560, %v553, %v557
    %v562 = vand.u32 2147483647, %v538
    %vm563 = vcmp.eq.f32.partialorder %v562, 8.507059e+37
    %v564 = vand.u32 %v538, 2147483648
    %v565 = vor.u32 1.1754944e-38, %v564
    %v566 = vsel %vm563, %v565, %v561
    %v567 = vmul.f32 %v530, %v552
    %v568 = vmul.f32 %v532, %v566
    %569 = vrot.lane.b32.xlu0 %v76, 40
    %v570 = vpop.permute.xlu0 %569
    %571 = vrot.lane.b32.xlu0 %v79, 40
    %v572 = vpop.permute.xlu0 %571
    %v576 = vsel %vm133, %v567, 0
    %v579 = vsel %vm133, %v568, 0
    %581 = vmatpush.msra.mxu0 0.0
    %582 = vmatpush.msra.mxu0 0.0
    %583 = vmatpush.msra.mxu0 0.0
    %584 = vmatpush.msra.mxu0 0.0
    %585 = vmatpush.msra.mxu0 0.0
    %586 = vmatpush.msra.mxu0 0.0
    %587 = vmatpush.msra.mxu0 0.0
    %588 = vmatpush.msra.mxu0 0.0
    %589 = vmatpush.msra.mxu0 0.0
    %590 = vmatpush.msra.mxu0 0.0
    %591 = vmatpush.msra.mxu0 0.0
    %592 = vmatpush.msra.mxu0 0.0
    %593 = vmatpush.msra.mxu0 0.0
    %594 = vmatpush.msra.mxu0 0.0
    %595 = vmatpush.msra.mxu0 %v572
    %596 = vmatpush.msra.mxu0 %v570
    %597 = vmatmul.f32.gmra.mxu0 %v576
    %v598 = vpop.f32.mrf.mxu0
    %v599 = vadd.f32 0.0, %v598
    %600 = vmatmul.f32.gmra.mxu0 %v579
    %v601 = vpop.f32.mrf.mxu0
    %v602 = vadd.f32 0.0, %v601
    %603 = vdwg.mxu0
    %606 = vrot.lane.b32.xlu0 %v341, 8
    %v607 = vpop.permute.xlu0 %606
    %608 = vrot.lane.b32.xlu0 %v344, 8
    %v609 = vpop.permute.xlu0 %608
    %614 = vrot.lane.b32.xlu0 %v470, 16
    %v615 = vpop.permute.xlu0 %614
    %616 = vrot.lane.b32.xlu0 %v473, 16
    %v617 = vpop.permute.xlu0 %616
    %622 = vrot.lane.b32.xlu0 %v599, 24
    %v623 = vpop.permute.xlu0 %622
    %624 = vrot.lane.b32.xlu0 %v602, 24
    %v625 = vpop.permute.xlu0 %624
    %v628 = vsel %vm95, %v212, %v607
    %v629 = vsel %vm95, %v215, %v609
    %v630 = vsel %vm133, %v628, %v615
    %v631 = vsel %vm133, %v629, %v617
    %vm632 = vcmask 195584
    %v633 = vsel %vm632, %v630, %v623
    %v634 = vsel %vm632, %v631, %v625
    %s635 = scalar_lea.vmem %s3, 16
    %v636 = vld [vmem:[%s635] sm:$0xff]
    %v637 = vld [vmem:[%s635 + $0x8] sm:$0xff]
    %640 = vrot.lane.b32.xlu0 %v82, 96
    %v641 = vpop.permute.xlu0 %640
    %642 = vrot.lane.b32.xlu0 %v85, 96
    %v643 = vpop.permute.xlu0 %642
    %v644 = vsel %vm95, %v82, 0
    %v646 = vsel %vm95, %v85, 0
    %v648 = vsel %vm95, %v641, 0
    %v650 = vsel %vm95, %v643, 0
    %652 = vmatpush.xpose.msra.mxu0 0.0
    %653 = vmatpush.xpose.msra.mxu0 0.0
    %654 = vmatpush.xpose.msra.mxu0 0.0
    %655 = vmatpush.xpose.msra.mxu0 0.0
    %656 = vmatpush.xpose.msra.mxu0 0.0
    %657 = vmatpush.xpose.msra.mxu0 0.0
    %658 = vmatpush.xpose.msra.mxu0 0.0
    %659 = vmatpush.xpose.msra.mxu0 0.0
    %660 = vmatpush.xpose.msra.mxu0 0.0
    %661 = vmatpush.xpose.msra.mxu0 0.0
    %662 = vmatpush.xpose.msra.mxu0 0.0
    %663 = vmatpush.xpose.msra.mxu0 0.0
    %664 = vmatpush.xpose.msra.mxu0 0.0
    %665 = vmatpush.xpose.msra.mxu0 0.0
    %666 = vmatpush.xpose.msra.mxu0 %v650
    %667 = vmatpush.xpose.msra.mxu0 %v648
    %668 = vmatmul.f32.gmra.mxu0 %v644
    %v669 = vpop.f32.mrf.mxu0
    %v670 = vadd.f32 0.0, %v669
    %671 = vmatmul.f32.gmra.mxu0 %v646
    %v672 = vpop.f32.mrf.mxu0
    %v673 = vadd.f32 0.0, %v672
    %674 = vdwg.mxu0
    %v675 = vmul.f32 %v670, %v636
    %v676 = vmul.f32 %v673, %v637
    %s677 = scalar_lea.vmem %s2, 64
    %v678 = vld [vmem:[%s677] sm:$0xff]
    %v679 = vld [vmem:[%s677 + $0x8] sm:$0xff]
    %v680 = vadd.f32 %v675, %v678
    %v681 = vadd.f32 %v676, %v679
    %v682 = vsel %vm133, %v680, -inf
    %683 = vmax.xlane.f32.xlu0 %v682
    %v684 = vpop.xlane.xlu0 %683
    %v685 = vsel %vm133, %v681, -inf
    %686 = vmax.xlane.f32.xlu0 %v685
    %v687 = vpop.xlane.xlu0 %686
    %v688 = vsub.f32 %v680, %v684
    %v689 = vsub.f32 %v681, %v687
    %v690 = vmul.f32 %v688, 1.442695
    %v691 = vpow.pop %v690
    %v692 = vmul.f32 %v689, 1.442695
    %v693 = vpow.pop %v692
    %v694 = vsel %vm133, %v691, 0.0
    %695 = vadd.xlane.f32.xlu0 %v694
    %v696 = vpop.xlane.xlu0 %695
    %v697 = vsel %vm133, %v693, 0.0
    %698 = vadd.xlane.f32.xlu0 %v697
    %v699 = vpop.xlane.xlu0 %698
    %v700 = vrcp.pop %v696
    %v701 = vmul.f32 %v696, %v700
    %v702 = vsub.f32 1.0, %v701
    %v703 = vmul.f32 %v700, %v702
    %v704 = vadd.f32 %v700, %v703
    %vm705 = vweird.f32 %v696
    %vm706 = vweird.f32 %v700
    %vm707 = vmor %vm705, %vm706
    %v708 = vsel %vm707, %v700, %v704
    %v709 = vand.u32 2147483647, %v696
    %vm710 = vcmp.eq.f32.partialorder %v709, 8.507059e+37
    %v711 = vand.u32 %v696, 2147483648
    %v712 = vor.u32 1.1754944e-38, %v711
    %v713 = vsel %vm710, %v712, %v708
    %v714 = vrcp.pop %v699
    %v715 = vmul.f32 %v699, %v714
    %v716 = vsub.f32 1.0, %v715
    %v717 = vmul.f32 %v714, %v716
    %v718 = vadd.f32 %v714, %v717
    %vm719 = vweird.f32 %v699
    %vm720 = vweird.f32 %v714
    %vm721 = vmor %vm719, %vm720
    %v722 = vsel %vm721, %v714, %v718
    %v723 = vand.u32 2147483647, %v699
    %vm724 = vcmp.eq.f32.partialorder %v723, 8.507059e+37
    %v725 = vand.u32 %v699, 2147483648
    %v726 = vor.u32 1.1754944e-38, %v725
    %v727 = vsel %vm724, %v726, %v722
    %v728 = vmul.f32 %v691, %v713
    %v729 = vmul.f32 %v693, %v727
    %730 = vrot.lane.b32.xlu0 %v82, 64
    %v731 = vpop.permute.xlu0 %730
    %732 = vrot.lane.b32.xlu0 %v85, 64
    %v733 = vpop.permute.xlu0 %732
    %v737 = vsel %vm133, %v728, 0
    %v740 = vsel %vm133, %v729, 0
    %742 = vmatpush.msra.mxu0 0.0
    %743 = vmatpush.msra.mxu0 0.0
    %744 = vmatpush.msra.mxu0 0.0
    %745 = vmatpush.msra.mxu0 0.0
    %746 = vmatpush.msra.mxu0 0.0
    %747 = vmatpush.msra.mxu0 0.0
    %748 = vmatpush.msra.mxu0 0.0
    %749 = vmatpush.msra.mxu0 0.0
    %750 = vmatpush.msra.mxu0 0.0
    %751 = vmatpush.msra.mxu0 0.0
    %752 = vmatpush.msra.mxu0 0.0
    %753 = vmatpush.msra.mxu0 0.0
    %754 = vmatpush.msra.mxu0 0.0
    %755 = vmatpush.msra.mxu0 0.0
    %756 = vmatpush.msra.mxu0 %v733
    %757 = vmatpush.msra.mxu0 %v731
    %758 = vmatmul.f32.gmra.mxu0 %v737
    %v759 = vpop.f32.mrf.mxu0
    %v760 = vadd.f32 0.0, %v759
    %761 = vmatmul.f32.gmra.mxu0 %v740
    %v762 = vpop.f32.mrf.mxu0
    %v763 = vadd.f32 0.0, %v762
    %764 = vdwg.mxu0
    %765 = vrot.lane.b32.xlu0 %v82, 120
    %v766 = vpop.permute.xlu0 %765
    %767 = vrot.lane.b32.xlu0 %v85, 120
    %v768 = vpop.permute.xlu0 %767
    %769 = vrot.lane.b32.xlu0 %v82, 88
    %v770 = vpop.permute.xlu0 %769
    %771 = vrot.lane.b32.xlu0 %v85, 88
    %v772 = vpop.permute.xlu0 %771
    %v773 = vsel %vm95, %v766, 0
    %v775 = vsel %vm95, %v768, 0
    %v777 = vsel %vm95, %v770, 0
    %v779 = vsel %vm95, %v772, 0
    %781 = vmatpush.xpose.msra.mxu0 0.0
    %782 = vmatpush.xpose.msra.mxu0 0.0
    %783 = vmatpush.xpose.msra.mxu0 0.0
    %784 = vmatpush.xpose.msra.mxu0 0.0
    %785 = vmatpush.xpose.msra.mxu0 0.0
    %786 = vmatpush.xpose.msra.mxu0 0.0
    %787 = vmatpush.xpose.msra.mxu0 0.0
    %788 = vmatpush.xpose.msra.mxu0 0.0
    %789 = vmatpush.xpose.msra.mxu0 0.0
    %790 = vmatpush.xpose.msra.mxu0 0.0
    %791 = vmatpush.xpose.msra.mxu0 0.0
    %792 = vmatpush.xpose.msra.mxu0 0.0
    %793 = vmatpush.xpose.msra.mxu0 0.0
    %794 = vmatpush.xpose.msra.mxu0 0.0
    %795 = vmatpush.xpose.msra.mxu0 %v779
    %796 = vmatpush.xpose.msra.mxu0 %v777
    %797 = vmatmul.f32.gmra.mxu0 %v773
    %v798 = vpop.f32.mrf.mxu0
    %v799 = vadd.f32 0.0, %v798
    %800 = vmatmul.f32.gmra.mxu0 %v775
    %v801 = vpop.f32.mrf.mxu0
    %v802 = vadd.f32 0.0, %v801
    %803 = vdwg.mxu0
    %v804 = vmul.f32 %v799, %v636
    %v805 = vmul.f32 %v802, %v637
    %s806 = scalar_lea.vmem %s2, 80
    %v807 = vld [vmem:[%s806] sm:$0xff]
    %v808 = vld [vmem:[%s806 + $0x8] sm:$0xff]
    %v809 = vadd.f32 %v804, %v807
    %v810 = vadd.f32 %v805, %v808
    %v811 = vsel %vm133, %v809, -inf
    %812 = vmax.xlane.f32.xlu0 %v811
    %v813 = vpop.xlane.xlu0 %812
    %v814 = vsel %vm133, %v810, -inf
    %815 = vmax.xlane.f32.xlu0 %v814
    %v816 = vpop.xlane.xlu0 %815
    %v817 = vsub.f32 %v809, %v813
    %v818 = vsub.f32 %v810, %v816
    %v819 = vmul.f32 %v817, 1.442695
    %v820 = vpow.pop %v819
    %v821 = vmul.f32 %v818, 1.442695
    %v822 = vpow.pop %v821
    %v823 = vsel %vm133, %v820, 0.0
    %824 = vadd.xlane.f32.xlu0 %v823
    %v825 = vpop.xlane.xlu0 %824
    %v826 = vsel %vm133, %v822, 0.0
    %827 = vadd.xlane.f32.xlu0 %v826
    %v828 = vpop.xlane.xlu0 %827
    %v829 = vrcp.pop %v825
    %v830 = vmul.f32 %v825, %v829
    %v831 = vsub.f32 1.0, %v830
    %v832 = vmul.f32 %v829, %v831
    %v833 = vadd.f32 %v829, %v832
    %vm834 = vweird.f32 %v825
    %vm835 = vweird.f32 %v829
    %vm836 = vmor %vm834, %vm835
    %v837 = vsel %vm836, %v829, %v833
    %v838 = vand.u32 2147483647, %v825
    %vm839 = vcmp.eq.f32.partialorder %v838, 8.507059e+37
    %v840 = vand.u32 %v825, 2147483648
    %v841 = vor.u32 1.1754944e-38, %v840
    %v842 = vsel %vm839, %v841, %v837
    %v843 = vrcp.pop %v828
    %v844 = vmul.f32 %v828, %v843
    %v845 = vsub.f32 1.0, %v844
    %v846 = vmul.f32 %v843, %v845
    %v847 = vadd.f32 %v843, %v846
    %vm848 = vweird.f32 %v828
    %vm849 = vweird.f32 %v843
    %vm850 = vmor %vm848, %vm849
    %v851 = vsel %vm850, %v843, %v847
    %v852 = vand.u32 2147483647, %v828
    %vm853 = vcmp.eq.f32.partialorder %v852, 8.507059e+37
    %v854 = vand.u32 %v828, 2147483648
    %v855 = vor.u32 1.1754944e-38, %v854
    %v856 = vsel %vm853, %v855, %v851
    %v857 = vmul.f32 %v820, %v842
    %v858 = vmul.f32 %v822, %v856
    %859 = vrot.lane.b32.xlu0 %v82, 56
    %v860 = vpop.permute.xlu0 %859
    %861 = vrot.lane.b32.xlu0 %v85, 56
    %v862 = vpop.permute.xlu0 %861
    %v866 = vsel %vm133, %v857, 0
    %v869 = vsel %vm133, %v858, 0
    %871 = vmatpush.msra.mxu0 0.0
    %872 = vmatpush.msra.mxu0 0.0
    %873 = vmatpush.msra.mxu0 0.0
    %874 = vmatpush.msra.mxu0 0.0
    %875 = vmatpush.msra.mxu0 0.0
    %876 = vmatpush.msra.mxu0 0.0
    %877 = vmatpush.msra.mxu0 0.0
    %878 = vmatpush.msra.mxu0 0.0
    %879 = vmatpush.msra.mxu0 0.0
    %880 = vmatpush.msra.mxu0 0.0
    %881 = vmatpush.msra.mxu0 0.0
    %882 = vmatpush.msra.mxu0 0.0
    %883 = vmatpush.msra.mxu0 0.0
    %884 = vmatpush.msra.mxu0 0.0
    %885 = vmatpush.msra.mxu0 %v862
    %886 = vmatpush.msra.mxu0 %v860
    %887 = vmatmul.f32.gmra.mxu0 %v866
    %v888 = vpop.f32.mrf.mxu0
    %v889 = vadd.f32 0.0, %v888
    %890 = vmatmul.f32.gmra.mxu0 %v869
    %v891 = vpop.f32.mrf.mxu0
    %v892 = vadd.f32 0.0, %v891
    %893 = vdwg.mxu0
    %894 = vrot.lane.b32.xlu0 %v82, 112
    %v895 = vpop.permute.xlu0 %894
    %896 = vrot.lane.b32.xlu0 %v85, 112
    %v897 = vpop.permute.xlu0 %896
    %898 = vrot.lane.b32.xlu0 %v82, 80
    %v899 = vpop.permute.xlu0 %898
    %900 = vrot.lane.b32.xlu0 %v85, 80
    %v901 = vpop.permute.xlu0 %900
    %v902 = vsel %vm95, %v895, 0
    %v904 = vsel %vm95, %v897, 0
    %v906 = vsel %vm95, %v899, 0
    %v908 = vsel %vm95, %v901, 0
    %910 = vmatpush.xpose.msra.mxu0 0.0
    %911 = vmatpush.xpose.msra.mxu0 0.0
    %912 = vmatpush.xpose.msra.mxu0 0.0
    %913 = vmatpush.xpose.msra.mxu0 0.0
    %914 = vmatpush.xpose.msra.mxu0 0.0
    %915 = vmatpush.xpose.msra.mxu0 0.0
    %916 = vmatpush.xpose.msra.mxu0 0.0
    %917 = vmatpush.xpose.msra.mxu0 0.0
    %918 = vmatpush.xpose.msra.mxu0 0.0
    %919 = vmatpush.xpose.msra.mxu0 0.0
    %920 = vmatpush.xpose.msra.mxu0 0.0
    %921 = vmatpush.xpose.msra.mxu0 0.0
    %922 = vmatpush.xpose.msra.mxu0 0.0
    %923 = vmatpush.xpose.msra.mxu0 0.0
    %924 = vmatpush.xpose.msra.mxu0 %v908
    %925 = vmatpush.xpose.msra.mxu0 %v906
    %926 = vmatmul.f32.gmra.mxu0 %v902
    %v927 = vpop.f32.mrf.mxu0
    %v928 = vadd.f32 0.0, %v927
    %929 = vmatmul.f32.gmra.mxu0 %v904
    %v930 = vpop.f32.mrf.mxu0
    %v931 = vadd.f32 0.0, %v930
    %932 = vdwg.mxu0
    %v933 = vmul.f32 %v928, %v636
    %v934 = vmul.f32 %v931, %v637
    %s935 = scalar_lea.vmem %s2, 96
    %v936 = vld [vmem:[%s935] sm:$0xff]
    %v937 = vld [vmem:[%s935 + $0x8] sm:$0xff]
    %v938 = vadd.f32 %v933, %v936
    %v939 = vadd.f32 %v934, %v937
    %v940 = vsel %vm133, %v938, -inf
    %941 = vmax.xlane.f32.xlu0 %v940
    %v942 = vpop.xlane.xlu0 %941
    %v943 = vsel %vm133, %v939, -inf
    %944 = vmax.xlane.f32.xlu0 %v943
    %v945 = vpop.xlane.xlu0 %944
    %v946 = vsub.f32 %v938, %v942
    %v947 = vsub.f32 %v939, %v945
    %v948 = vmul.f32 %v946, 1.442695
    %v949 = vpow.pop %v948
    %v950 = vmul.f32 %v947, 1.442695
    %v951 = vpow.pop %v950
    %v952 = vsel %vm133, %v949, 0.0
    %953 = vadd.xlane.f32.xlu0 %v952
    %v954 = vpop.xlane.xlu0 %953
    %v955 = vsel %vm133, %v951, 0.0
    %956 = vadd.xlane.f32.xlu0 %v955
    %v957 = vpop.xlane.xlu0 %956
    %v958 = vrcp.pop %v954
    %v959 = vmul.f32 %v954, %v958
    %v960 = vsub.f32 1.0, %v959
    %v961 = vmul.f32 %v958, %v960
    %v962 = vadd.f32 %v958, %v961
    %vm963 = vweird.f32 %v954
    %vm964 = vweird.f32 %v958
    %vm965 = vmor %vm963, %vm964
    %v966 = vsel %vm965, %v958, %v962
    %v967 = vand.u32 2147483647, %v954
    %vm968 = vcmp.eq.f32.partialorder %v967, 8.507059e+37
    %v969 = vand.u32 %v954, 2147483648
    %v970 = vor.u32 1.1754944e-38, %v969
    %v971 = vsel %vm968, %v970, %v966
    %v972 = vrcp.pop %v957
    %v973 = vmul.f32 %v957, %v972
    %v974 = vsub.f32 1.0, %v973
    %v975 = vmul.f32 %v972, %v974
    %v976 = vadd.f32 %v972, %v975
    %vm977 = vweird.f32 %v957
    %vm978 = vweird.f32 %v972
    %vm979 = vmor %vm977, %vm978
    %v980 = vsel %vm979, %v972, %v976
    %v981 = vand.u32 2147483647, %v957
    %vm982 = vcmp.eq.f32.partialorder %v981, 8.507059e+37
    %v983 = vand.u32 %v957, 2147483648
    %v984 = vor.u32 1.1754944e-38, %v983
    %v985 = vsel %vm982, %v984, %v980
    %v986 = vmul.f32 %v949, %v971
    %v987 = vmul.f32 %v951, %v985
    %988 = vrot.lane.b32.xlu0 %v82, 48
    %v989 = vpop.permute.xlu0 %988
    %990 = vrot.lane.b32.xlu0 %v85, 48
    %v991 = vpop.permute.xlu0 %990
    %v995 = vsel %vm133, %v986, 0
    %v998 = vsel %vm133, %v987, 0
    %1000 = vmatpush.msra.mxu0 0.0
    %1001 = vmatpush.msra.mxu0 0.0
    %1002 = vmatpush.msra.mxu0 0.0
    %1003 = vmatpush.msra.mxu0 0.0
    %1004 = vmatpush.msra.mxu0 0.0
    %1005 = vmatpush.msra.mxu0 0.0
    %1006 = vmatpush.msra.mxu0 0.0
    %1007 = vmatpush.msra.mxu0 0.0
    %1008 = vmatpush.msra.mxu0 0.0
    %1009 = vmatpush.msra.mxu0 0.0
    %1010 = vmatpush.msra.mxu0 0.0
    %1011 = vmatpush.msra.mxu0 0.0
    %1012 = vmatpush.msra.mxu0 0.0
    %1013 = vmatpush.msra.mxu0 0.0
    %1014 = vmatpush.msra.mxu0 %v991
    %1015 = vmatpush.msra.mxu0 %v989
    %1016 = vmatmul.f32.gmra.mxu0 %v995
    %v1017 = vpop.f32.mrf.mxu0
    %v1018 = vadd.f32 0.0, %v1017
    %1019 = vmatmul.f32.gmra.mxu0 %v998
    %v1020 = vpop.f32.mrf.mxu0
    %v1021 = vadd.f32 0.0, %v1020
    %1022 = vdwg.mxu0
    %1023 = vrot.lane.b32.xlu0 %v82, 104
    %v1024 = vpop.permute.xlu0 %1023
    %1025 = vrot.lane.b32.xlu0 %v85, 104
    %v1026 = vpop.permute.xlu0 %1025
    %1027 = vrot.lane.b32.xlu0 %v82, 72
    %v1028 = vpop.permute.xlu0 %1027
    %1029 = vrot.lane.b32.xlu0 %v85, 72
    %v1030 = vpop.permute.xlu0 %1029
    %v1031 = vsel %vm95, %v1024, 0
    %v1033 = vsel %vm95, %v1026, 0
    %v1035 = vsel %vm95, %v1028, 0
    %v1037 = vsel %vm95, %v1030, 0
    %1039 = vmatpush.xpose.msra.mxu0 0.0
    %1040 = vmatpush.xpose.msra.mxu0 0.0
    %1041 = vmatpush.xpose.msra.mxu0 0.0
    %1042 = vmatpush.xpose.msra.mxu0 0.0
    %1043 = vmatpush.xpose.msra.mxu0 0.0
    %1044 = vmatpush.xpose.msra.mxu0 0.0
    %1045 = vmatpush.xpose.msra.mxu0 0.0
    %1046 = vmatpush.xpose.msra.mxu0 0.0
    %1047 = vmatpush.xpose.msra.mxu0 0.0
    %1048 = vmatpush.xpose.msra.mxu0 0.0
    %1049 = vmatpush.xpose.msra.mxu0 0.0
    %1050 = vmatpush.xpose.msra.mxu0 0.0
    %1051 = vmatpush.xpose.msra.mxu0 0.0
    %1052 = vmatpush.xpose.msra.mxu0 0.0
    %1053 = vmatpush.xpose.msra.mxu0 %v1037
    %1054 = vmatpush.xpose.msra.mxu0 %v1035
    %1055 = vmatmul.f32.gmra.mxu0 %v1031
    %v1056 = vpop.f32.mrf.mxu0
    %v1057 = vadd.f32 0.0, %v1056
    %1058 = vmatmul.f32.gmra.mxu0 %v1033
    %v1059 = vpop.f32.mrf.mxu0
    %v1060 = vadd.f32 0.0, %v1059
    %1061 = vdwg.mxu0
    %v1062 = vmul.f32 %v1057, %v636
    %v1063 = vmul.f32 %v1060, %v637
    %s1064 = scalar_lea.vmem %s2, 112
    %v1065 = vld [vmem:[%s1064] sm:$0xff]
    %v1066 = vld [vmem:[%s1064 + $0x8] sm:$0xff]
    %v1067 = vadd.f32 %v1062, %v1065
    %v1068 = vadd.f32 %v1063, %v1066
    %v1069 = vsel %vm133, %v1067, -inf
    %1070 = vmax.xlane.f32.xlu0 %v1069
    %v1071 = vpop.xlane.xlu0 %1070
    %v1072 = vsel %vm133, %v1068, -inf
    %1073 = vmax.xlane.f32.xlu0 %v1072
    %v1074 = vpop.xlane.xlu0 %1073
    %v1075 = vsub.f32 %v1067, %v1071
    %v1076 = vsub.f32 %v1068, %v1074
    %v1077 = vmul.f32 %v1075, 1.442695
    %v1078 = vpow.pop %v1077
    %v1079 = vmul.f32 %v1076, 1.442695
    %v1080 = vpow.pop %v1079
    %v1081 = vsel %vm133, %v1078, 0.0
    %1082 = vadd.xlane.f32.xlu0 %v1081
    %v1083 = vpop.xlane.xlu0 %1082
    %v1084 = vsel %vm133, %v1080, 0.0
    %1085 = vadd.xlane.f32.xlu0 %v1084
    %v1086 = vpop.xlane.xlu0 %1085
    %v1087 = vrcp.pop %v1083
    %v1088 = vmul.f32 %v1083, %v1087
    %v1089 = vsub.f32 1.0, %v1088
    %v1090 = vmul.f32 %v1087, %v1089
    %v1091 = vadd.f32 %v1087, %v1090
    %vm1092 = vweird.f32 %v1083
    %vm1093 = vweird.f32 %v1087
    %vm1094 = vmor %vm1092, %vm1093
    %v1095 = vsel %vm1094, %v1087, %v1091
    %v1096 = vand.u32 2147483647, %v1083
    %vm1097 = vcmp.eq.f32.partialorder %v1096, 8.507059e+37
    %v1098 = vand.u32 %v1083, 2147483648
    %v1099 = vor.u32 1.1754944e-38, %v1098
    %v1100 = vsel %vm1097, %v1099, %v1095
    %v1101 = vrcp.pop %v1086
    %v1102 = vmul.f32 %v1086, %v1101
    %v1103 = vsub.f32 1.0, %v1102
    %v1104 = vmul.f32 %v1101, %v1103
    %v1105 = vadd.f32 %v1101, %v1104
    %vm1106 = vweird.f32 %v1086
    %vm1107 = vweird.f32 %v1101
    %vm1108 = vmor %vm1106, %vm1107
    %v1109 = vsel %vm1108, %v1101, %v1105
    %v1110 = vand.u32 2147483647, %v1086
    %vm1111 = vcmp.eq.f32.partialorder %v1110, 8.507059e+37
    %v1112 = vand.u32 %v1086, 2147483648
    %v1113 = vor.u32 1.1754944e-38, %v1112
    %v1114 = vsel %vm1111, %v1113, %v1109
    %v1115 = vmul.f32 %v1078, %v1100
    %v1116 = vmul.f32 %v1080, %v1114
    %1117 = vrot.lane.b32.xlu0 %v82, 40
    %v1118 = vpop.permute.xlu0 %1117
    %1119 = vrot.lane.b32.xlu0 %v85, 40
    %v1120 = vpop.permute.xlu0 %1119
    %v1124 = vsel %vm133, %v1115, 0
    %v1127 = vsel %vm133, %v1116, 0
    %1129 = vmatpush.msra.mxu0 0.0
    %1130 = vmatpush.msra.mxu0 0.0
    %1131 = vmatpush.msra.mxu0 0.0
    %1132 = vmatpush.msra.mxu0 0.0
    %1133 = vmatpush.msra.mxu0 0.0
    %1134 = vmatpush.msra.mxu0 0.0
    %1135 = vmatpush.msra.mxu0 0.0
    %1136 = vmatpush.msra.mxu0 0.0
    %1137 = vmatpush.msra.mxu0 0.0
    %1138 = vmatpush.msra.mxu0 0.0
    %1139 = vmatpush.msra.mxu0 0.0
    %1140 = vmatpush.msra.mxu0 0.0
    %1141 = vmatpush.msra.mxu0 0.0
    %1142 = vmatpush.msra.mxu0 0.0
    %1143 = vmatpush.msra.mxu0 %v1120
    %1144 = vmatpush.msra.mxu0 %v1118
    %1145 = vmatmul.f32.gmra.mxu0 %v1124
    %v1146 = vpop.f32.mrf.mxu0
    %v1147 = vadd.f32 0.0, %v1146
    %1148 = vmatmul.f32.gmra.mxu0 %v1127
    %v1149 = vpop.f32.mrf.mxu0
    %v1150 = vadd.f32 0.0, %v1149
    %1151 = vdwg.mxu0
    %1154 = vrot.lane.b32.xlu0 %v889, 8
    %v1155 = vpop.permute.xlu0 %1154
    %1156 = vrot.lane.b32.xlu0 %v892, 8
    %v1157 = vpop.permute.xlu0 %1156
    %1162 = vrot.lane.b32.xlu0 %v1018, 16
    %v1163 = vpop.permute.xlu0 %1162
    %1164 = vrot.lane.b32.xlu0 %v1021, 16
    %v1165 = vpop.permute.xlu0 %1164
    %1170 = vrot.lane.b32.xlu0 %v1147, 24
    %v1171 = vpop.permute.xlu0 %1170
    %1172 = vrot.lane.b32.xlu0 %v1150, 24
    %v1173 = vpop.permute.xlu0 %1172
    %v1176 = vsel %vm95, %v760, %v1155
    %v1177 = vsel %vm95, %v763, %v1157
    %v1178 = vsel %vm133, %v1176, %v1163
    %v1179 = vsel %vm133, %v1177, %v1165
    %v1180 = vsel %vm632, %v1178, %v1171
    %v1181 = vsel %vm632, %v1179, %v1173
    %v1182 = vld [vmem:[%s4] sm:$0xff]
    %v1183 = vld [vmem:[%s4 + $0x8] sm:$0xff]
    %v1184 = vld [vmem:[%s4 + $0x10] sm:$0xff]
    %v1185 = vld [vmem:[%s4 + $0x18] sm:$0xff]
    %vm1186 = vcmask 261120
    %v1188 = vsel %vm1186, %v633, 0
    %v1191 = vsel %vm1186, %v634, 0
    %v1194 = vsel %vm1186, %v1180, 0
    %v1197 = vsel %vm1186, %v1181, 0
    %1199 = vmatpush.msra.mxu0 0.0
    %1200 = vmatpush.msra.mxu0 0.0
    %1201 = vmatpush.msra.mxu0 0.0
    %1202 = vmatpush.msra.mxu0 0.0
    %1203 = vmatpush.msra.mxu0 0.0
    %1204 = vmatpush.msra.mxu0 0.0
    %1205 = vmatpush.msra.mxu0 0.0
    %1206 = vmatpush.msra.mxu0 0.0
    %1207 = vmatpush.msra.mxu0 0.0
    %1208 = vmatpush.msra.mxu0 0.0
    %1209 = vmatpush.msra.mxu0 0.0
    %1210 = vmatpush.msra.mxu0 0.0
    %1211 = vmatpush.msra.mxu0 %v1185
    %1212 = vmatpush.msra.mxu0 %v1184
    %1213 = vmatpush.msra.mxu0 %v1183
    %1214 = vmatpush.msra.mxu0 %v1182
    %1215 = vmatmul.f32.gmra.mxu0 %v1188
    %v1216 = vpop.f32.mrf.mxu0
    %v1217 = vadd.f32 0.0, %v1216
    %1218 = vmatmul.f32.gmra.mxu0 %v1191
    %v1219 = vpop.f32.mrf.mxu0
    %v1220 = vadd.f32 0.0, %v1219
    %1221 = vmatmul.f32.gmra.mxu0 %v1194
    %v1222 = vpop.f32.mrf.mxu0
    %v1223 = vadd.f32 0.0, %v1222
    %1224 = vmatmul.f32.gmra.mxu0 %v1197
    %v1225 = vpop.f32.mrf.mxu0
    %v1226 = vadd.f32 0.0, %v1225
    %1227 = vdwg.mxu0
    %v1228 = vadd.f32 %v29, %v1217
    %v1229 = vadd.f32 %v30, %v1220
    %v1230 = vadd.f32 %v31, %v1223
    %v1231 = vadd.f32 %v32, %v1226
    %v1232 = vsel %vm1186, %v1228, 0.0
    %1233 = vadd.xlane.f32.xlu0 %v1232
    %v1234 = vpop.xlane.xlu0 %1233
    %v1235 = vsel %vm1186, %v1229, 0.0
    %1236 = vadd.xlane.f32.xlu0 %v1235
    %v1237 = vpop.xlane.xlu0 %1236
    %v1238 = vsel %vm1186, %v1230, 0.0
    %1239 = vadd.xlane.f32.xlu0 %v1238
    %v1240 = vpop.xlane.xlu0 %1239
    %v1241 = vsel %vm1186, %v1231, 0.0
    %1242 = vadd.xlane.f32.xlu0 %v1241
    %v1243 = vpop.xlane.xlu0 %1242
    %v1244 = vrcp.pop 32.0
    %v1245 = vmul.f32 32.0, %v1244
    %v1246 = vsub.f32 1.0, %v1245
    %v1247 = vmul.f32 %v1244, %v1246
    %v1248 = vadd.f32 %v1244, %v1247
    %vm1249 = vweird.f32 %v1244
    %v1250 = vsel %vm1249, %v1244, %v1248
    %v1251 = vmul.f32 %v1234, %v1250
    %v1252 = vmul.f32 %v1237, %v1250
    %v1253 = vmul.f32 %v1240, %v1250
    %v1254 = vmul.f32 %v1243, %v1250
    %v1255 = vsub.f32 %v1228, %v1251
    %v1256 = vsub.f32 %v1229, %v1252
    %v1257 = vsub.f32 %v1230, %v1253
    %v1258 = vsub.f32 %v1231, %v1254
    %v1259 = vmul.f32 %v1255, %v1255
    %v1260 = vmul.f32 %v1256, %v1256
    %v1261 = vmul.f32 %v1257, %v1257
    %v1262 = vmul.f32 %v1258, %v1258
    %v1263 = vsel %vm1186, %v1259, 0.0
    %1264 = vadd.xlane.f32.xlu0 %v1263
    %v1265 = vpop.xlane.xlu0 %1264
    %v1266 = vsel %vm1186, %v1260, 0.0
    %1267 = vadd.xlane.f32.xlu0 %v1266
    %v1268 = vpop.xlane.xlu0 %1267
    %v1269 = vsel %vm1186, %v1261, 0.0
    %1270 = vadd.xlane.f32.xlu0 %v1269
    %v1271 = vpop.xlane.xlu0 %1270
    %v1272 = vsel %vm1186, %v1262, 0.0
    %1273 = vadd.xlane.f32.xlu0 %v1272
    %v1274 = vpop.xlane.xlu0 %1273
    %v1275 = vmul.f32 %v1265, %v1250
    %v1276 = vmul.f32 %v1268, %v1250
    %v1277 = vmul.f32 %v1271, %v1250
    %v1278 = vmul.f32 %v1274, %v1250
    %v1279 = vadd.f32 %v1275, 1e-05
    %v1280 = vadd.f32 %v1276, 1e-05
    %v1281 = vadd.f32 %v1277, 1e-05
    %v1282 = vadd.f32 %v1278, 1e-05
    %v1283 = vrsqrt.pop %v1279
    %v1284 = vmul.f32 %v1283, %v1279
    %v1285 = vmul.f32 %v1284, %v1283
    %v1286 = vmul.f32 0.5, %v1285
    %v1287 = vsub.f32 1.5, %v1286
    %v1288 = vmul.f32 %v1283, %v1287
    %vm1289 = vweird.f32 %v1279
    %vm1290 = vweird.f32 %v1283
    %vm1291 = vmor %vm1289, %vm1290
    %v1292 = vsel %vm1291, %v1283, %v1288
    %v1293 = vrsqrt.pop %v1280
    %v1294 = vmul.f32 %v1293, %v1280
    %v1295 = vmul.f32 %v1294, %v1293
    %v1296 = vmul.f32 0.5, %v1295
    %v1297 = vsub.f32 1.5, %v1296
    %v1298 = vmul.f32 %v1293, %v1297
    %vm1299 = vweird.f32 %v1280
    %vm1300 = vweird.f32 %v1293
    %vm1301 = vmor %vm1299, %vm1300
    %v1302 = vsel %vm1301, %v1293, %v1298
    %v1303 = vrsqrt.pop %v1281
    %v1304 = vmul.f32 %v1303, %v1281
    %v1305 = vmul.f32 %v1304, %v1303
    %v1306 = vmul.f32 0.5, %v1305
    %v1307 = vsub.f32 1.5, %v1306
    %v1308 = vmul.f32 %v1303, %v1307
    %vm1309 = vweird.f32 %v1281
    %vm1310 = vweird.f32 %v1303
    %vm1311 = vmor %vm1309, %vm1310
    %v1312 = vsel %vm1311, %v1303, %v1308
    %v1313 = vrsqrt.pop %v1282
    %v1314 = vmul.f32 %v1313, %v1282
    %v1315 = vmul.f32 %v1314, %v1313
    %v1316 = vmul.f32 0.5, %v1315
    %v1317 = vsub.f32 1.5, %v1316
    %v1318 = vmul.f32 %v1313, %v1317
    %vm1319 = vweird.f32 %v1282
    %vm1320 = vweird.f32 %v1313
    %vm1321 = vmor %vm1319, %vm1320
    %v1322 = vsel %vm1321, %v1313, %v1318
    %v1323 = vmul.f32 %v1255, %v1292
    %v1324 = vmul.f32 %v1256, %v1302
    %v1325 = vmul.f32 %v1257, %v1312
    %v1326 = vmul.f32 %v1258, %v1322
    %v1327 = vld [vmem:[%s5] sm:$0x1]
    %v1329 = vperm.slane %v1327, 0
    %v1331 = vmul.f32 %v1323, %v1329
    %v1332 = vmul.f32 %v1324, %v1329
    %v1333 = vmul.f32 %v1325, %v1329
    %v1334 = vmul.f32 %v1326, %v1329
    %v1335 = vld [vmem:[%s6] sm:$0x1]
    %v1337 = vperm.slane %v1335, 0
    %v1339 = vadd.f32 %v1331, %v1337
    %v1340 = vadd.f32 %v1332, %v1337
    %v1341 = vadd.f32 %v1333, %v1337
    %v1342 = vadd.f32 %v1334, %v1337
    %1343 = vst.msk [vmem:[#allocation2] sm:$0xff] %vm1186, %v1339
    %1344 = vst.msk [vmem:[#allocation2 + $0x8] sm:$0xff] %vm1186, %v1340
    %1345 = vst.msk [vmem:[#allocation2 + $0x10] sm:$0xff] %vm1186, %v1341
    %1346 = vst.msk [vmem:[#allocation2 + $0x18] sm:$0xff] %vm1186, %v1342
    %1347 = vrot.lane.b32.xlu0 %v309, 16
    %v1348 = vpop.permute.xlu0 %1347
    %1349 = vrot.lane.b32.xlu0 %v310, 16
    %v1350 = vpop.permute.xlu0 %1349
    %1353 = vrot.lane.b32.xlu0 %v438, 32
    %v1354 = vpop.permute.xlu0 %1353
    %1355 = vrot.lane.b32.xlu0 %v439, 32
    %v1356 = vpop.permute.xlu0 %1355
    %1359 = vrot.lane.b32.xlu0 %v567, 48
    %v1360 = vpop.permute.xlu0 %1359
    %1361 = vrot.lane.b32.xlu0 %v568, 48
    %v1362 = vpop.permute.xlu0 %1361
    %1365 = vrot.lane.b32.xlu0 %v728, 64
    %v1366 = vpop.permute.xlu0 %1365
    %1367 = vrot.lane.b32.xlu0 %v729, 64
    %v1368 = vpop.permute.xlu0 %1367
    %1371 = vrot.lane.b32.xlu0 %v857, 80
    %v1372 = vpop.permute.xlu0 %1371
    %1373 = vrot.lane.b32.xlu0 %v858, 80
    %v1374 = vpop.permute.xlu0 %1373
    %1377 = vrot.lane.b32.xlu0 %v986, 96
    %v1378 = vpop.permute.xlu0 %1377
    %1379 = vrot.lane.b32.xlu0 %v987, 96
    %v1380 = vpop.permute.xlu0 %1379
    %1383 = vrot.lane.b32.xlu0 %v1115, 112
    %v1384 = vpop.permute.xlu0 %1383
    %1385 = vrot.lane.b32.xlu0 %v1116, 112
    %v1386 = vpop.permute.xlu0 %1385
    %v1389 = vsel %vm133, %v180, %v1348
    %v1390 = vsel %vm133, %v181, %v1350
    %v1391 = vsel %vm1186, %v1389, %v1354
    %v1392 = vsel %vm1186, %v1390, %v1356
    %vm1393 = vcmask 392192
    %v1394 = vsel %vm1393, %v1391, %v1360
    %v1395 = vsel %vm1393, %v1392, %v1362
    %vm1396 = vcmask 523264
    %v1397 = vsel %vm1396, %v1394, %v1366
    %v1398 = vsel %vm1396, %v1395, %v1368
    %vm1399 = vcmask 654336
    %v1400 = vsel %vm1399, %v1397, %v1372
    %v1401 = vsel %vm1399, %v1398, %v1374
    %v1402 = vsel %vm45, %v1400, %v1378
    %v1403 = vsel %vm45, %v1401, %v1380
    %vm1404 = vcmask 916480
    %v1405 = vsel %vm1404, %v1402, %v1384
    %v1406 = vsel %vm1404, %v1403, %v1386
    %1407 = vst [vmem:[%s8] sm:$0xff] %v1405
    %1408 = vst [vmem:[%s8 + $0x8] sm:$0xff] %v1406
    // Predicated region
    $region30: #{mha_rope3d_bias_forward.1} parent=1 // pred_check
      _
    $region31: #{mha_rope3d_bias_forward.1} parent=1 // pred_check_branch
      %1410 = sbr.rel (0) target = $region33
    $region32: #{mha_rope3d_bias_forward.1} parent=1 // pred_region
      %1412 = vsyncadd [#allocation3], 0
      %s1413 = sshll.u32 [#allocation2], 4
      %s1414 = int_to_ptr.vmem [resolvable:$true] %s1413
      %s1415 = sshll.u32 %s7, 4
      %s1416 = int_to_ptr.hbm [resolvable:$true] %s1415
      %1421 = dma.vmem_to_hbm [thread:$0]  %s1414, 512, %s1416, [#allocation3], 128, 128, 8
    $region33: #{mha_rope3d_bias_forward.1} parent=1 // pred_fallthru
      _
    // Predicated region
    $region34: #{mha_rope3d_bias_forward.1} parent=1 // pred_check
      _
    $region35: #{mha_rope3d_bias_forward.1} parent=1 // pred_check_branch
      %1423 = sbr.rel (0) target = $region37
    $region36: #{mha_rope3d_bias_forward.1} parent=1 // pred_region
      _
    $region37: #{mha_rope3d_bias_forward.1} parent=1 // pred_fallthru
      _
    // Predicated region
    $region38: #{mha_rope3d_bias_forward.1} parent=1 // pred_check
      _
    $region39: #{mha_rope3d_bias_forward.1} parent=1 // pred_check_branch
      %1425 = sbr.rel (0) target = $region41
    $region40: #{mha_rope3d_bias_forward.1} parent=1 // pred_region
      %1427 = dma.done [#allocation3], 512
    $region41: #{mha_rope3d_bias_forward.1} parent=1 // pred_fallthru
      _
    // Predicated region
    $region42: #{mha_rope3d_bias_forward.1} parent=1 // pred_check
      _
    $region43: #{mha_rope3d_bias_forward.1} parent=1 // pred_check_branch
      %1429 = sbr.rel (0) target = $region45
    $region44: #{mha_rope3d_bias_forward.1} parent=1 // pred_region
      _
    $region45: #{mha_rope3d_bias_forward.1} parent=1 // pred_fallthru
      _
    %1430 = vsyncpa [#allocation3], 1

</llo_original>
